<compile_context>
chip_gen: v5e
topology: v5e:2x2
jax: 0.10.0
libtpu: 0.0.40
codegen_flags: <defaults>
</compile_context>

<pallas_src>
import jax
import jax.numpy as jnp
from jax.experimental import pallas as pl
from jax.experimental.pallas import tpu as pltpu

# ----- hyperparameters (small, consistent with the module defaults scaled down) -----
N_LAYERS = 2
D_MODEL = 32
D_K = 8
D_V = 8
H = 4
D_FF = 32
PADDING_IDX = 0
LN_EPS = 1e-5          # nn.LayerNorm default
MASK_BIAS = -1e30      # finite "minus infinity" for the key-padding bias

HK = H * D_K
HV = H * D_V


def _layer_norm(x, gamma, beta):
    mu = jnp.mean(x, axis=-1, keepdims=True)
    var = jnp.mean((x - mu) ** 2, axis=-1, keepdims=True)
    return (x - mu) * jax.lax.rsqrt(var + LN_EPS) * gamma + beta


def encoder_stack_kernel(x_ref, bias_ref,
                         wqkv_ref, bqkv_ref, wo_ref, bo_ref, g1_ref, be1_ref,
                         w1_ref, b1_ref, w2_ref, b2_ref, g2_ref, be2_ref,
                         out_ref):
    # x_ref:    (1, S, D)  one batch element
    # bias_ref: (1, 1, S)  additive key bias (0.0 for real tokens, -1e30 for padding)
    # weights:  stacked along a leading N_LAYERS axis, fully resident in VMEM
    # out_ref:  (1, N_LAYERS, S, D)  per-layer outputs
    h = x_ref[0]                      # (S, D)
    key_bias = bias_ref[...]          # (1, 1, S) -> broadcasts over (H, S_q, S_k)
    scale = 1.0 / float(D_K) ** 0.5

    for l in range(N_LAYERS):         # static unroll over layers; activation stays in VMEM/vregs
        # ---- fused QKV projection: one matmul instead of three ----
        qkv = jnp.dot(h, wqkv_ref[l], preferred_element_type=jnp.float32) + bqkv_ref[l]  # (S, 3*H*D_K)

        # head-leading (H, S, d) views built by stacking static lane slices (no 3-D transpose)
        qh = jnp.stack([qkv[:, i * D_K:(i + 1) * D_K] for i in range(H)], axis=0)             # (H, S, D_K)
        kh = jnp.stack([qkv[:, HK + i * D_K:HK + (i + 1) * D_K] for i in range(H)], axis=0)   # (H, S, D_K)
        vh = jnp.stack([qkv[:, 2 * HK + i * D_V:2 * HK + (i + 1) * D_V] for i in range(H)], axis=0)  # (H, S, D_V)

        # ---- batched scaled-dot-product attention over all heads ----
        att = jnp.einsum('hqd,hkd->hqk', qh, kh,
                         preferred_element_type=jnp.float32) * scale + key_bias              # (H, S, S)
        att = att - jnp.max(att, axis=-1, keepdims=True)
        p = jnp.exp(att)
        p = p * pl.reciprocal(jnp.sum(p, axis=-1, keepdims=True), approx=True)               # softmax
        oh = jnp.einsum('hqk,hkd->hqd', p, vh, preferred_element_type=jnp.float32)           # (H, S, D_V)

        # ---- output projection applied per head then summed (avoids lane concat) ----
        o = jnp.einsum('hqd,hdm->hqm', oh, wo_ref[l], preferred_element_type=jnp.float32)    # (H, S, D)
        o = jnp.sum(o, axis=0) + bo_ref[l]                                                   # (S, D)

        # ---- residual + LayerNorm (dropout identity in eval mode) ----
        h1 = _layer_norm(h + o, g1_ref[l], be1_ref[l])

        # ---- position-wise feed-forward ----
        f = jnp.maximum(jnp.dot(h1, w1_ref[l], preferred_element_type=jnp.float32) + b1_ref[l], 0.0)
        f = jnp.dot(f, w2_ref[l], preferred_element_type=jnp.float32) + b2_ref[l]

        # ---- residual + LayerNorm ----
        h = _layer_norm(h1 + f, g2_ref[l], be2_ref[l])

        out_ref[0, l] = h


def multi_level_encoder(x, params):
    """MultiLevelEncoder.forward. Returns (outs (B,N,S,D), attention_mask (B,1,1,S) bool)."""
    B, S, D = x.shape
    attention_mask = (jnp.sum(x, -1) == PADDING_IDX)[:, None, None, :]                 # (B,1,1,S) bool
    key_bias = jnp.where(attention_mask[:, 0],
                         jnp.float32(MASK_BIAS), jnp.float32(0.0))                     # (B,1,S) f32

    weight_specs = [pl.BlockSpec(p.shape, lambda b, _nd=p.ndim: (0,) * _nd) for p in params]
    outs = pl.pallas_call(
        encoder_stack_kernel,
        out_shape=jax.ShapeDtypeStruct((B, N_LAYERS, S, D), jnp.float32),
        grid=(B,),
        in_specs=[pl.BlockSpec((1, S, D), lambda b: (b, 0, 0)),
                  pl.BlockSpec((1, 1, S), lambda b: (b, 0, 0))] + weight_specs,
        out_specs=pl.BlockSpec((1, N_LAYERS, S, D), lambda b: (b, 0, 0, 0)),
        compiler_params=pltpu.CompilerParams(dimension_semantics=("parallel",)),
    )(x, key_bias, *params)
    return outs, attention_mask


# --------------------------- parameters -------------------------------------
def init_layer_params(key):
    """Deterministic synthetic parameters for one EncoderLayer (fused/reshaped for the kernel)."""
    ks = jax.random.split(key, 8)
    w = lambda k, shape: jax.random.normal(k, shape, jnp.float32) * 0.05
    wq = w(ks[0], (D_MODEL, HK))
    wk = w(ks[1], (D_MODEL, HK))
    wv = w(ks[2], (D_MODEL, HV))
    wqkv = jnp.concatenate([wq, wk, wv], axis=1)                 # (D, 3*H*D_K)  fused QKV weight
    bqkv = jnp.zeros((1, 2 * HK + HV), jnp.float32)
    wo = w(ks[3], (HV, D_MODEL)).reshape(H, D_V, D_MODEL)        # head-major output projection
    bo = jnp.zeros((1, D_MODEL), jnp.float32)
    g1 = jnp.ones((1, D_MODEL), jnp.float32); be1 = jnp.zeros((1, D_MODEL), jnp.float32)
    w1 = w(ks[4], (D_MODEL, D_FF)); b1 = w(ks[5], (1, D_FF))
    w2 = w(ks[6], (D_FF, D_MODEL)); b2 = w(ks[7], (1, D_MODEL))
    g2 = jnp.ones((1, D_MODEL), jnp.float32); be2 = jnp.zeros((1, D_MODEL), jnp.float32)
    return (wqkv, bqkv, wo, bo, g1, be1, w1, b1, w2, b2, g2, be2)


def init_stacked_params(key):
    """Stack per-layer params along a leading N_LAYERS axis."""
    per_layer = [init_layer_params(k) for k in jax.random.split(key, N_LAYERS)]
    n_fields = len(per_layer[0])
    return tuple(jnp.stack([layer[i] for layer in per_layer], axis=0) for i in range(n_fields))


# --------------------------- pure-JAX reference ------------------------------
def reference_forward(x, params):
    (wqkv, bqkv, wo, bo, g1, be1, w1, b1, w2, b2, g2, be2) = params
    B, S, _ = x.shape
    mask = (jnp.sum(x, -1) == PADDING_IDX)[:, None, None, :]
    h = x
    outs = []
    for l in range(N_LAYERS):
        qkv = h @ wqkv[l] + bqkv[l]
        q = qkv[..., :HK].reshape(B, S, H, D_K).transpose(0, 2, 1, 3)
        k = qkv[..., HK:2 * HK].reshape(B, S, H, D_K).transpose(0, 2, 1, 3)
        v = qkv[..., 2 * HK:].reshape(B, S, H, D_V).transpose(0, 2, 1, 3)
        att = jnp.einsum('bhqd,bhkd->bhqk', q, k) / jnp.sqrt(jnp.float32(D_K))
        att = jnp.where(mask, MASK_BIAS, att)
        att = jax.nn.softmax(att, axis=-1)
        o = jnp.einsum('bhqk,bhkd->bhqd', att, v).transpose(0, 2, 1, 3).reshape(B, S, HV)
        o = o @ wo[l].reshape(HV, D_MODEL) + bo[l]
        h1 = _layer_norm(h + o, g1[l], be1[l])
        f = jnp.maximum(h1 @ w1[l] + b1[l], 0.0) @ w2[l] + b2[l]
        h = _layer_norm(h1 + f, g2[l], be2[l])
        outs.append(h)
    return jnp.stack(outs, axis=1), mask


if __name__ == "__main__":
    key = jax.random.PRNGKey(0)
    kx, kp = jax.random.split(key)
    B, S = 2, 8
    x = jax.random.normal(kx, (B, S, D_MODEL), jnp.float32)
    params = init_stacked_params(kp)

    fwd = jax.jit(multi_level_encoder)
    outs, attention_mask = fwd(x, params)
    outs = jax.block_until_ready(outs)
    attention_mask = jax.block_until_ready(attention_mask)

    ref_outs, ref_mask = reference_forward(x, params)

    assert outs.shape == (B, N_LAYERS, S, D_MODEL), outs.shape
    assert attention_mask.shape == (B, 1, 1, S), attention_mask.shape
    assert outs.dtype == jnp.float32 and attention_mask.dtype == jnp.bool_
    assert bool(jnp.all(jnp.isfinite(outs)))
    assert bool(jnp.all(attention_mask == ref_mask))
    assert bool(jnp.allclose(outs, ref_outs, atol=2e-2, rtol=2e-2)), \
        float(jnp.max(jnp.abs(outs - ref_outs)))
    print("KERNEL_OK")
</pallas_src>

<mosaic_0001>
module attributes {stable_mosaic.version = 11 : i64} {
  func.func @encoder_stack_kernel(%arg0: i32, %arg1: memref<1x8x32xf32, #tpu.memory_space<vmem>>, %arg2: memref<1x1x8xf32, #tpu.memory_space<vmem>>, %arg3: memref<2x32x96xf32, #tpu.memory_space<vmem>>, %arg4: memref<2x1x96xf32, #tpu.memory_space<vmem>>, %arg5: memref<2x4x8x32xf32, #tpu.memory_space<vmem>>, %arg6: memref<2x1x32xf32, #tpu.memory_space<vmem>>, %arg7: memref<2x1x32xf32, #tpu.memory_space<vmem>>, %arg8: memref<2x1x32xf32, #tpu.memory_space<vmem>>, %arg9: memref<2x32x32xf32, #tpu.memory_space<vmem>>, %arg10: memref<2x1x32xf32, #tpu.memory_space<vmem>>, %arg11: memref<2x32x32xf32, #tpu.memory_space<vmem>>, %arg12: memref<2x1x32xf32, #tpu.memory_space<vmem>>, %arg13: memref<2x1x32xf32, #tpu.memory_space<vmem>>, %arg14: memref<2x1x32xf32, #tpu.memory_space<vmem>>, %arg15: memref<1x2x8x32xf32, #tpu.memory_space<vmem>>) attributes {dimension_semantics = [#tpu.dimension_semantics<parallel>], iteration_bounds = array<i64: 2>, scalar_prefetch = 0 : i64, scratch_operands = 0 : i64, tpu.core_type = #tpu.core_type<tc>, window_params = [{transform_indices = @transform_0, window_bounds = array<i64: 1, 8, 32>}, {transform_indices = @transform_1, window_bounds = array<i64: 1, 1, 8>}, {pipeline_mode = #tpu.pipeline_mode<synchronous>, transform_indices = @transform_2, window_bounds = array<i64: 2, 32, 96>}, {pipeline_mode = #tpu.pipeline_mode<synchronous>, transform_indices = @transform_3, window_bounds = array<i64: 2, 1, 96>}, {pipeline_mode = #tpu.pipeline_mode<synchronous>, transform_indices = @transform_4, window_bounds = array<i64: 2, 4, 8, 32>}, {pipeline_mode = #tpu.pipeline_mode<synchronous>, transform_indices = @transform_5, window_bounds = array<i64: 2, 1, 32>}, {pipeline_mode = #tpu.pipeline_mode<synchronous>, transform_indices = @transform_6, window_bounds = array<i64: 2, 1, 32>}, {pipeline_mode = #tpu.pipeline_mode<synchronous>, transform_indices = @transform_7, window_bounds = array<i64: 2, 1, 32>}, {pipeline_mode = #tpu.pipeline_mode<synchronous>, transform_indices = @transform_8, window_bounds = array<i64: 2, 32, 32>}, {pipeline_mode = #tpu.pipeline_mode<synchronous>, transform_indices = @transform_9, window_bounds = array<i64: 2, 1, 32>}, {pipeline_mode = #tpu.pipeline_mode<synchronous>, transform_indices = @transform_10, window_bounds = array<i64: 2, 32, 32>}, {pipeline_mode = #tpu.pipeline_mode<synchronous>, transform_indices = @transform_11, window_bounds = array<i64: 2, 1, 32>}, {pipeline_mode = #tpu.pipeline_mode<synchronous>, transform_indices = @transform_12, window_bounds = array<i64: 2, 1, 32>}, {pipeline_mode = #tpu.pipeline_mode<synchronous>, transform_indices = @transform_13, window_bounds = array<i64: 2, 1, 32>}, {transform_indices = @transform_14, window_bounds = array<i64: 1, 2, 8, 32>}]} {
    %c0 = arith.constant 0 : index
    %c0_0 = arith.constant 0 : index
    %c0_1 = arith.constant 0 : index
    %0 = vector.load %arg1[%c0, %c0_0, %c0_1] : memref<1x8x32xf32, #tpu.memory_space<vmem>>, vector<1x8x32xf32>
    %1 = vector.shape_cast %0 : vector<1x8x32xf32> to vector<8x32xf32>
    %c0_2 = arith.constant 0 : index
    %c0_3 = arith.constant 0 : index
    %c0_4 = arith.constant 0 : index
    %2 = vector.load %arg2[%c0_2, %c0_3, %c0_4] : memref<1x1x8xf32, #tpu.memory_space<vmem>>, vector<1x1x8xf32>
    %c0_5 = arith.constant 0 : index
    %c0_6 = arith.constant 0 : index
    %c0_7 = arith.constant 0 : index
    %3 = vector.load %arg3[%c0_5, %c0_6, %c0_7] : memref<2x32x96xf32, #tpu.memory_space<vmem>>, vector<1x32x96xf32>
    %4 = vector.shape_cast %3 : vector<1x32x96xf32> to vector<32x96xf32>
    %cst = arith.constant dense<0.000000e+00> : vector<8x96xf32>
    %5 = tpu.matmul %1, %4, %cst {dimension_numbers = #tpu.dot_dimension_numbers<[1], [0], [0], [1], [0, 0, 1, 1], [], []>} : vector<8x32xf32>, vector<32x96xf32>, vector<8x96xf32> -> vector<8x96xf32>
    %c0_8 = arith.constant 0 : index
    %c0_9 = arith.constant 0 : index
    %c0_10 = arith.constant 0 : index
    %6 = vector.load %arg4[%c0_8, %c0_9, %c0_10] : memref<2x1x96xf32, #tpu.memory_space<vmem>>, vector<1x1x96xf32>
    %7 = vector.shape_cast %6 : vector<1x1x96xf32> to vector<1x96xf32>
    %8 = vector.broadcast %7 : vector<1x96xf32> to vector<8x96xf32>
    %9 = arith.addf %5, %8 : vector<8x96xf32>
    %10 = vector.extract_strided_slice %9 {offsets = [0, 0], sizes = [8, 8], strides = [1, 1]} : vector<8x96xf32> to vector<8x8xf32>
    %11 = vector.extract_strided_slice %9 {offsets = [0, 8], sizes = [8, 8], strides = [1, 1]} : vector<8x96xf32> to vector<8x8xf32>
    %12 = vector.extract_strided_slice %9 {offsets = [0, 16], sizes = [8, 8], strides = [1, 1]} : vector<8x96xf32> to vector<8x8xf32>
    %13 = vector.extract_strided_slice %9 {offsets = [0, 24], sizes = [8, 8], strides = [1, 1]} : vector<8x96xf32> to vector<8x8xf32>
    %14 = vector.shape_cast %10 : vector<8x8xf32> to vector<1x8x8xf32>
    %15 = vector.shape_cast %11 : vector<8x8xf32> to vector<1x8x8xf32>
    %16 = vector.shape_cast %12 : vector<8x8xf32> to vector<1x8x8xf32>
    %17 = vector.shape_cast %13 : vector<8x8xf32> to vector<1x8x8xf32>
    %18 = tpu.concatenate %14, %15, %16, %17 in 0 : vector<1x8x8xf32>, vector<1x8x8xf32>, vector<1x8x8xf32>, vector<1x8x8xf32> -> vector<4x8x8xf32>
    %19 = vector.extract_strided_slice %9 {offsets = [0, 32], sizes = [8, 8], strides = [1, 1]} : vector<8x96xf32> to vector<8x8xf32>
    %20 = vector.extract_strided_slice %9 {offsets = [0, 40], sizes = [8, 8], strides = [1, 1]} : vector<8x96xf32> to vector<8x8xf32>
    %21 = vector.extract_strided_slice %9 {offsets = [0, 48], sizes = [8, 8], strides = [1, 1]} : vector<8x96xf32> to vector<8x8xf32>
    %22 = vector.extract_strided_slice %9 {offsets = [0, 56], sizes = [8, 8], strides = [1, 1]} : vector<8x96xf32> to vector<8x8xf32>
    %23 = vector.shape_cast %19 : vector<8x8xf32> to vector<1x8x8xf32>
    %24 = vector.shape_cast %20 : vector<8x8xf32> to vector<1x8x8xf32>
    %25 = vector.shape_cast %21 : vector<8x8xf32> to vector<1x8x8xf32>
    %26 = vector.shape_cast %22 : vector<8x8xf32> to vector<1x8x8xf32>
    %27 = tpu.concatenate %23, %24, %25, %26 in 0 : vector<1x8x8xf32>, vector<1x8x8xf32>, vector<1x8x8xf32>, vector<1x8x8xf32> -> vector<4x8x8xf32>
    %28 = vector.extract_strided_slice %9 {offsets = [0, 64], sizes = [8, 8], strides = [1, 1]} : vector<8x96xf32> to vector<8x8xf32>
    %29 = vector.extract_strided_slice %9 {offsets = [0, 72], sizes = [8, 8], strides = [1, 1]} : vector<8x96xf32> to vector<8x8xf32>
    %30 = vector.extract_strided_slice %9 {offsets = [0, 80], sizes = [8, 8], strides = [1, 1]} : vector<8x96xf32> to vector<8x8xf32>
    %31 = vector.extract_strided_slice %9 {offsets = [0, 88], sizes = [8, 8], strides = [1, 1]} : vector<8x96xf32> to vector<8x8xf32>
    %32 = vector.shape_cast %28 : vector<8x8xf32> to vector<1x8x8xf32>
    %33 = vector.shape_cast %29 : vector<8x8xf32> to vector<1x8x8xf32>
    %34 = vector.shape_cast %30 : vector<8x8xf32> to vector<1x8x8xf32>
    %35 = vector.shape_cast %31 : vector<8x8xf32> to vector<1x8x8xf32>
    %36 = tpu.concatenate %32, %33, %34, %35 in 0 : vector<1x8x8xf32>, vector<1x8x8xf32>, vector<1x8x8xf32>, vector<1x8x8xf32> -> vector<4x8x8xf32>
    "tpu.trace_start"() <{level = 10 : i32, message = "hqd,hkd->hqk"}> : () -> ()
    %cst_11 = arith.constant dense<0.000000e+00> : vector<4x8x8xf32>
    %37 = tpu.matmul %18, %27, %cst_11 {dimension_numbers = #tpu.dot_dimension_numbers<[2], [2], [1], [1], [0, 0, 0, 1, 1, 1], [0], [0]>} : vector<4x8x8xf32>, vector<4x8x8xf32>, vector<4x8x8xf32> -> vector<4x8x8xf32>
    "tpu.trace_stop"() : () -> ()
    %cst_12 = arith.constant 0.353553385 : f32
    %38 = vector.broadcast %cst_12 : f32 to vector<4x8x8xf32>
    %39 = arith.mulf %37, %38 : vector<4x8x8xf32>
    %40 = vector.broadcast %2 : vector<1x1x8xf32> to vector<4x8x8xf32>
    %41 = arith.addf %39, %40 : vector<4x8x8xf32>
    %cst_13 = arith.constant dense<0xFF800000> : vector<4x8xf32>
    %42 = vector.multi_reduction <maximumf>, %41, %cst_13 [2] : vector<4x8x8xf32> to vector<4x8xf32>
    %43 = vector.shape_cast %42 : vector<4x8xf32> to vector<4x8x1xf32>
    %44 = vector.broadcast %43 : vector<4x8x1xf32> to vector<4x8x8xf32>
    %45 = arith.subf %41, %44 : vector<4x8x8xf32>
    %46 = math.exp %45 : vector<4x8x8xf32>
    %cst_14 = arith.constant dense<0.000000e+00> : vector<4x8xf32>
    %47 = vector.multi_reduction <add>, %46, %cst_14 [2] : vector<4x8x8xf32> to vector<4x8xf32>
    %48 = vector.shape_cast %47 : vector<4x8xf32> to vector<4x8x1xf32>
    %49 = tpu.reciprocal %48 {approx = true} : vector<4x8x1xf32> -> vector<4x8x1xf32>
    %50 = vector.broadcast %49 : vector<4x8x1xf32> to vector<4x8x8xf32>
    %51 = arith.mulf %46, %50 : vector<4x8x8xf32>
    "tpu.trace_start"() <{level = 10 : i32, message = "hqk,hkd->hqd"}> : () -> ()
    %cst_15 = arith.constant dense<0.000000e+00> : vector<4x8x8xf32>
    %52 = tpu.matmul %51, %36, %cst_15 {dimension_numbers = #tpu.dot_dimension_numbers<[2], [1], [1], [2], [0, 0, 0, 1, 1, 2], [0], [0]>} : vector<4x8x8xf32>, vector<4x8x8xf32>, vector<4x8x8xf32> -> vector<4x8x8xf32>
    "tpu.trace_stop"() : () -> ()
    %c0_16 = arith.constant 0 : index
    %c0_17 = arith.constant 0 : index
    %c0_18 = arith.constant 0 : index
    %c0_19 = arith.constant 0 : index
    %53 = vector.load %arg5[%c0_16, %c0_17, %c0_18, %c0_19] : memref<2x4x8x32xf32, #tpu.memory_space<vmem>>, vector<1x4x8x32xf32>
    %54 = vector.shape_cast %53 : vector<1x4x8x32xf32> to vector<4x8x32xf32>
    "tpu.trace_start"() <{level = 10 : i32, message = "hqd,hdm->hqm"}> : () -> ()
    %cst_20 = arith.constant dense<0.000000e+00> : vector<4x8x32xf32>
    %55 = tpu.matmul %52, %54, %cst_20 {dimension_numbers = #tpu.dot_dimension_numbers<[2], [1], [1], [2], [0, 0, 0, 1, 1, 2], [0], [0]>} : vector<4x8x8xf32>, vector<4x8x32xf32>, vector<4x8x32xf32> -> vector<4x8x32xf32>
    "tpu.trace_stop"() : () -> ()
    %cst_21 = arith.constant dense<0.000000e+00> : vector<8x32xf32>
    %56 = vector.multi_reduction <add>, %55, %cst_21 [0] : vector<4x8x32xf32> to vector<8x32xf32>
    %c0_22 = arith.constant 0 : index
    %c0_23 = arith.constant 0 : index
    %c0_24 = arith.constant 0 : index
    %57 = vector.load %arg6[%c0_22, %c0_23, %c0_24] : memref<2x1x32xf32, #tpu.memory_space<vmem>>, vector<1x1x32xf32>
    %58 = vector.shape_cast %57 : vector<1x1x32xf32> to vector<1x32xf32>
    %59 = vector.broadcast %58 : vector<1x32xf32> to vector<8x32xf32>
    %60 = arith.addf %56, %59 : vector<8x32xf32>
    %61 = arith.addf %1, %60 : vector<8x32xf32>
    %c0_25 = arith.constant 0 : index
    %c0_26 = arith.constant 0 : index
    %c0_27 = arith.constant 0 : index
    %62 = vector.load %arg7[%c0_25, %c0_26, %c0_27] : memref<2x1x32xf32, #tpu.memory_space<vmem>>, vector<1x1x32xf32>
    %63 = vector.shape_cast %62 : vector<1x1x32xf32> to vector<1x32xf32>
    %c0_28 = arith.constant 0 : index
    %c0_29 = arith.constant 0 : index
    %c0_30 = arith.constant 0 : index
    %64 = vector.load %arg8[%c0_28, %c0_29, %c0_30] : memref<2x1x32xf32, #tpu.memory_space<vmem>>, vector<1x1x32xf32>
    %65 = vector.shape_cast %64 : vector<1x1x32xf32> to vector<1x32xf32>
    %cst_31 = arith.constant dense<0.000000e+00> : vector<8xf32>
    %66 = vector.multi_reduction <add>, %61, %cst_31 [1] : vector<8x32xf32> to vector<8xf32>
    %67 = vector.shape_cast %66 : vector<8xf32> to vector<8x1xf32>
    %cst_32 = arith.constant 3.200000e+01 : f32
    %68 = vector.broadcast %cst_32 : f32 to vector<8x1xf32>
    %69 = arith.divf %67, %68 : vector<8x1xf32>
    %70 = vector.broadcast %69 : vector<8x1xf32> to vector<8x32xf32>
    %71 = arith.subf %61, %70 : vector<8x32xf32>
    %72 = arith.mulf %71, %71 : vector<8x32xf32>
    %cst_33 = arith.constant dense<0.000000e+00> : vector<8xf32>
    %73 = vector.multi_reduction <add>, %72, %cst_33 [1] : vector<8x32xf32> to vector<8xf32>
    %74 = vector.shape_cast %73 : vector<8xf32> to vector<8x1xf32>
    %cst_34 = arith.constant 3.200000e+01 : f32
    %75 = vector.broadcast %cst_34 : f32 to vector<8x1xf32>
    %76 = arith.divf %74, %75 : vector<8x1xf32>
    %77 = vector.broadcast %69 : vector<8x1xf32> to vector<8x32xf32>
    %78 = arith.subf %61, %77 : vector<8x32xf32>
    %cst_35 = arith.constant 9.99999974E-6 : f32
    %79 = vector.broadcast %cst_35 : f32 to vector<8x1xf32>
    %80 = arith.addf %76, %79 : vector<8x1xf32>
    %81 = math.rsqrt %80 : vector<8x1xf32>
    %82 = vector.broadcast %81 : vector<8x1xf32> to vector<8x32xf32>
    %83 = arith.mulf %78, %82 : vector<8x32xf32>
    %84 = vector.broadcast %63 : vector<1x32xf32> to vector<8x32xf32>
    %85 = arith.mulf %83, %84 : vector<8x32xf32>
    %86 = vector.broadcast %65 : vector<1x32xf32> to vector<8x32xf32>
    %87 = arith.addf %85, %86 : vector<8x32xf32>
    %c0_36 = arith.constant 0 : index
    %c0_37 = arith.constant 0 : index
    %c0_38 = arith.constant 0 : index
    %88 = vector.load %arg9[%c0_36, %c0_37, %c0_38] : memref<2x32x32xf32, #tpu.memory_space<vmem>>, vector<1x32x32xf32>
    %89 = vector.shape_cast %88 : vector<1x32x32xf32> to vector<32x32xf32>
    %cst_39 = arith.constant dense<0.000000e+00> : vector<8x32xf32>
    %90 = tpu.matmul %87, %89, %cst_39 {dimension_numbers = #tpu.dot_dimension_numbers<[1], [0], [0], [1], [0, 0, 1, 1], [], []>} : vector<8x32xf32>, vector<32x32xf32>, vector<8x32xf32> -> vector<8x32xf32>
    %c0_40 = arith.constant 0 : index
    %c0_41 = arith.constant 0 : index
    %c0_42 = arith.constant 0 : index
    %91 = vector.load %arg10[%c0_40, %c0_41, %c0_42] : memref<2x1x32xf32, #tpu.memory_space<vmem>>, vector<1x1x32xf32>
    %92 = vector.shape_cast %91 : vector<1x1x32xf32> to vector<1x32xf32>
    %93 = vector.broadcast %92 : vector<1x32xf32> to vector<8x32xf32>
    %94 = arith.addf %90, %93 : vector<8x32xf32>
    %cst_43 = arith.constant 0.000000e+00 : f32
    %95 = vector.broadcast %cst_43 : f32 to vector<8x32xf32>
    %96 = arith.maximumf %94, %95 : vector<8x32xf32>
    %c0_44 = arith.constant 0 : index
    %c0_45 = arith.constant 0 : index
    %c0_46 = arith.constant 0 : index
    %97 = vector.load %arg11[%c0_44, %c0_45, %c0_46] : memref<2x32x32xf32, #tpu.memory_space<vmem>>, vector<1x32x32xf32>
    %98 = vector.shape_cast %97 : vector<1x32x32xf32> to vector<32x32xf32>
    %cst_47 = arith.constant dense<0.000000e+00> : vector<8x32xf32>
    %99 = tpu.matmul %96, %98, %cst_47 {dimension_numbers = #tpu.dot_dimension_numbers<[1], [0], [0], [1], [0, 0, 1, 1], [], []>} : vector<8x32xf32>, vector<32x32xf32>, vector<8x32xf32> -> vector<8x32xf32>
    %c0_48 = arith.constant 0 : index
    %c0_49 = arith.constant 0 : index
    %c0_50 = arith.constant 0 : index
    %100 = vector.load %arg12[%c0_48, %c0_49, %c0_50] : memref<2x1x32xf32, #tpu.memory_space<vmem>>, vector<1x1x32xf32>
    %101 = vector.shape_cast %100 : vector<1x1x32xf32> to vector<1x32xf32>
    %102 = vector.broadcast %101 : vector<1x32xf32> to vector<8x32xf32>
    %103 = arith.addf %99, %102 : vector<8x32xf32>
    %104 = arith.addf %87, %103 : vector<8x32xf32>
    %c0_51 = arith.constant 0 : index
    %c0_52 = arith.constant 0 : index
    %c0_53 = arith.constant 0 : index
    %105 = vector.load %arg13[%c0_51, %c0_52, %c0_53] : memref<2x1x32xf32, #tpu.memory_space<vmem>>, vector<1x1x32xf32>
    %106 = vector.shape_cast %105 : vector<1x1x32xf32> to vector<1x32xf32>
    %c0_54 = arith.constant 0 : index
    %c0_55 = arith.constant 0 : index
    %c0_56 = arith.constant 0 : index
    %107 = vector.load %arg14[%c0_54, %c0_55, %c0_56] : memref<2x1x32xf32, #tpu.memory_space<vmem>>, vector<1x1x32xf32>
    %108 = vector.shape_cast %107 : vector<1x1x32xf32> to vector<1x32xf32>
    %cst_57 = arith.constant dense<0.000000e+00> : vector<8xf32>
    %109 = vector.multi_reduction <add>, %104, %cst_57 [1] : vector<8x32xf32> to vector<8xf32>
    %110 = vector.shape_cast %109 : vector<8xf32> to vector<8x1xf32>
    %cst_58 = arith.constant 3.200000e+01 : f32
    %111 = vector.broadcast %cst_58 : f32 to vector<8x1xf32>
    %112 = arith.divf %110, %111 : vector<8x1xf32>
    %113 = vector.broadcast %112 : vector<8x1xf32> to vector<8x32xf32>
    %114 = arith.subf %104, %113 : vector<8x32xf32>
    %115 = arith.mulf %114, %114 : vector<8x32xf32>
    %cst_59 = arith.constant dense<0.000000e+00> : vector<8xf32>
    %116 = vector.multi_reduction <add>, %115, %cst_59 [1] : vector<8x32xf32> to vector<8xf32>
    %117 = vector.shape_cast %116 : vector<8xf32> to vector<8x1xf32>
    %cst_60 = arith.constant 3.200000e+01 : f32
    %118 = vector.broadcast %cst_60 : f32 to vector<8x1xf32>
    %119 = arith.divf %117, %118 : vector<8x1xf32>
    %120 = vector.broadcast %112 : vector<8x1xf32> to vector<8x32xf32>
    %121 = arith.subf %104, %120 : vector<8x32xf32>
    %cst_61 = arith.constant 9.99999974E-6 : f32
    %122 = vector.broadcast %cst_61 : f32 to vector<8x1xf32>
    %123 = arith.addf %119, %122 : vector<8x1xf32>
    %124 = math.rsqrt %123 : vector<8x1xf32>
    %125 = vector.broadcast %124 : vector<8x1xf32> to vector<8x32xf32>
    %126 = arith.mulf %121, %125 : vector<8x32xf32>
    %127 = vector.broadcast %106 : vector<1x32xf32> to vector<8x32xf32>
    %128 = arith.mulf %126, %127 : vector<8x32xf32>
    %129 = vector.broadcast %108 : vector<1x32xf32> to vector<8x32xf32>
    %130 = arith.addf %128, %129 : vector<8x32xf32>
    %c0_62 = arith.constant 0 : index
    %c0_63 = arith.constant 0 : index
    %c0_64 = arith.constant 0 : index
    %c0_65 = arith.constant 0 : index
    %131 = vector.load %arg15[%c0_62, %c0_63, %c0_64, %c0_65] : memref<1x2x8x32xf32, #tpu.memory_space<vmem>>, vector<1x1x8x32xf32>
    %132 = vector.shape_cast %131 : vector<1x1x8x32xf32> to vector<8x32xf32>
    %133 = vector.shape_cast %130 : vector<8x32xf32> to vector<1x1x8x32xf32>
    tpu.vector_store %arg15[%c0_62, %c0_63, %c0_64, %c0_65], %133 {strides = array<i32>} : memref<1x2x8x32xf32, #tpu.memory_space<vmem>>, vector<1x1x8x32xf32>,
    %c1 = arith.constant 1 : index
    %c0_66 = arith.constant 0 : index
    %c0_67 = arith.constant 0 : index
    %134 = vector.load %arg3[%c1, %c0_66, %c0_67] : memref<2x32x96xf32, #tpu.memory_space<vmem>>, vector<1x32x96xf32>
    %135 = vector.shape_cast %134 : vector<1x32x96xf32> to vector<32x96xf32>
    %cst_68 = arith.constant dense<0.000000e+00> : vector<8x96xf32>
    %136 = tpu.matmul %130, %135, %cst_68 {dimension_numbers = #tpu.dot_dimension_numbers<[1], [0], [0], [1], [0, 0, 1, 1], [], []>} : vector<8x32xf32>, vector<32x96xf32>, vector<8x96xf32> -> vector<8x96xf32>
    %c1_69 = arith.constant 1 : index
    %c0_70 = arith.constant 0 : index
    %c0_71 = arith.constant 0 : index
    %137 = vector.load %arg4[%c1_69, %c0_70, %c0_71] : memref<2x1x96xf32, #tpu.memory_space<vmem>>, vector<1x1x96xf32>
    %138 = vector.shape_cast %137 : vector<1x1x96xf32> to vector<1x96xf32>
    %139 = vector.broadcast %138 : vector<1x96xf32> to vector<8x96xf32>
    %140 = arith.addf %136, %139 : vector<8x96xf32>
    %141 = vector.extract_strided_slice %140 {offsets = [0, 0], sizes = [8, 8], strides = [1, 1]} : vector<8x96xf32> to vector<8x8xf32>
    %142 = vector.extract_strided_slice %140 {offsets = [0, 8], sizes = [8, 8], strides = [1, 1]} : vector<8x96xf32> to vector<8x8xf32>
    %143 = vector.extract_strided_slice %140 {offsets = [0, 16], sizes = [8, 8], strides = [1, 1]} : vector<8x96xf32> to vector<8x8xf32>
    %144 = vector.extract_strided_slice %140 {offsets = [0, 24], sizes = [8, 8], strides = [1, 1]} : vector<8x96xf32> to vector<8x8xf32>
    %145 = vector.shape_cast %141 : vector<8x8xf32> to vector<1x8x8xf32>
    %146 = vector.shape_cast %142 : vector<8x8xf32> to vector<1x8x8xf32>
    %147 = vector.shape_cast %143 : vector<8x8xf32> to vector<1x8x8xf32>
    %148 = vector.shape_cast %144 : vector<8x8xf32> to vector<1x8x8xf32>
    %149 = tpu.concatenate %145, %146, %147, %148 in 0 : vector<1x8x8xf32>, vector<1x8x8xf32>, vector<1x8x8xf32>, vector<1x8x8xf32> -> vector<4x8x8xf32>
    %150 = vector.extract_strided_slice %140 {offsets = [0, 32], sizes = [8, 8], strides = [1, 1]} : vector<8x96xf32> to vector<8x8xf32>
    %151 = vector.extract_strided_slice %140 {offsets = [0, 40], sizes = [8, 8], strides = [1, 1]} : vector<8x96xf32> to vector<8x8xf32>
    %152 = vector.extract_strided_slice %140 {offsets = [0, 48], sizes = [8, 8], strides = [1, 1]} : vector<8x96xf32> to vector<8x8xf32>
    %153 = vector.extract_strided_slice %140 {offsets = [0, 56], sizes = [8, 8], strides = [1, 1]} : vector<8x96xf32> to vector<8x8xf32>
    %154 = vector.shape_cast %150 : vector<8x8xf32> to vector<1x8x8xf32>
    %155 = vector.shape_cast %151 : vector<8x8xf32> to vector<1x8x8xf32>
    %156 = vector.shape_cast %152 : vector<8x8xf32> to vector<1x8x8xf32>
    %157 = vector.shape_cast %153 : vector<8x8xf32> to vector<1x8x8xf32>
    %158 = tpu.concatenate %154, %155, %156, %157 in 0 : vector<1x8x8xf32>, vector<1x8x8xf32>, vector<1x8x8xf32>, vector<1x8x8xf32> -> vector<4x8x8xf32>
    %159 = vector.extract_strided_slice %140 {offsets = [0, 64], sizes = [8, 8], strides = [1, 1]} : vector<8x96xf32> to vector<8x8xf32>
    %160 = vector.extract_strided_slice %140 {offsets = [0, 72], sizes = [8, 8], strides = [1, 1]} : vector<8x96xf32> to vector<8x8xf32>
    %161 = vector.extract_strided_slice %140 {offsets = [0, 80], sizes = [8, 8], strides = [1, 1]} : vector<8x96xf32> to vector<8x8xf32>
    %162 = vector.extract_strided_slice %140 {offsets = [0, 88], sizes = [8, 8], strides = [1, 1]} : vector<8x96xf32> to vector<8x8xf32>
    %163 = vector.shape_cast %159 : vector<8x8xf32> to vector<1x8x8xf32>
    %164 = vector.shape_cast %160 : vector<8x8xf32> to vector<1x8x8xf32>
    %165 = vector.shape_cast %161 : vector<8x8xf32> to vector<1x8x8xf32>
    %166 = vector.shape_cast %162 : vector<8x8xf32> to vector<1x8x8xf32>
    %167 = tpu.concatenate %163, %164, %165, %166 in 0 : vector<1x8x8xf32>, vector<1x8x8xf32>, vector<1x8x8xf32>, vector<1x8x8xf32> -> vector<4x8x8xf32>
    "tpu.trace_start"() <{level = 10 : i32, message = "hqd,hkd->hqk"}> : () -> ()
    %cst_72 = arith.constant dense<0.000000e+00> : vector<4x8x8xf32>
    %168 = tpu.matmul %149, %158, %cst_72 {dimension_numbers = #tpu.dot_dimension_numbers<[2], [2], [1], [1], [0, 0, 0, 1, 1, 1], [0], [0]>} : vector<4x8x8xf32>, vector<4x8x8xf32>, vector<4x8x8xf32> -> vector<4x8x8xf32>
    "tpu.trace_stop"() : () -> ()
    %cst_73 = arith.constant 0.353553385 : f32
    %169 = vector.broadcast %cst_73 : f32 to vector<4x8x8xf32>
    %170 = arith.mulf %168, %169 : vector<4x8x8xf32>
    %171 = vector.broadcast %2 : vector<1x1x8xf32> to vector<4x8x8xf32>
    %172 = arith.addf %170, %171 : vector<4x8x8xf32>
    %cst_74 = arith.constant dense<0xFF800000> : vector<4x8xf32>
    %173 = vector.multi_reduction <maximumf>, %172, %cst_74 [2] : vector<4x8x8xf32> to vector<4x8xf32>
    %174 = vector.shape_cast %173 : vector<4x8xf32> to vector<4x8x1xf32>
    %175 = vector.broadcast %174 : vector<4x8x1xf32> to vector<4x8x8xf32>
    %176 = arith.subf %172, %175 : vector<4x8x8xf32>
    %177 = math.exp %176 : vector<4x8x8xf32>
    %cst_75 = arith.constant dense<0.000000e+00> : vector<4x8xf32>
    %178 = vector.multi_reduction <add>, %177, %cst_75 [2] : vector<4x8x8xf32> to vector<4x8xf32>
    %179 = vector.shape_cast %178 : vector<4x8xf32> to vector<4x8x1xf32>
    %180 = tpu.reciprocal %179 {approx = true} : vector<4x8x1xf32> -> vector<4x8x1xf32>
    %181 = vector.broadcast %180 : vector<4x8x1xf32> to vector<4x8x8xf32>
    %182 = arith.mulf %177, %181 : vector<4x8x8xf32>
    "tpu.trace_start"() <{level = 10 : i32, message = "hqk,hkd->hqd"}> : () -> ()
    %cst_76 = arith.constant dense<0.000000e+00> : vector<4x8x8xf32>
    %183 = tpu.matmul %182, %167, %cst_76 {dimension_numbers = #tpu.dot_dimension_numbers<[2], [1], [1], [2], [0, 0, 0, 1, 1, 2], [0], [0]>} : vector<4x8x8xf32>, vector<4x8x8xf32>, vector<4x8x8xf32> -> vector<4x8x8xf32>
    "tpu.trace_stop"() : () -> ()
    %c1_77 = arith.constant 1 : index
    %c0_78 = arith.constant 0 : index
    %c0_79 = arith.constant 0 : index
    %c0_80 = arith.constant 0 : index
    %184 = vector.load %arg5[%c1_77, %c0_78, %c0_79, %c0_80] : memref<2x4x8x32xf32, #tpu.memory_space<vmem>>, vector<1x4x8x32xf32>
    %185 = vector.shape_cast %184 : vector<1x4x8x32xf32> to vector<4x8x32xf32>
    "tpu.trace_start"() <{level = 10 : i32, message = "hqd,hdm->hqm"}> : () -> ()
    %cst_81 = arith.constant dense<0.000000e+00> : vector<4x8x32xf32>
    %186 = tpu.matmul %183, %185, %cst_81 {dimension_numbers = #tpu.dot_dimension_numbers<[2], [1], [1], [2], [0, 0, 0, 1, 1, 2], [0], [0]>} : vector<4x8x8xf32>, vector<4x8x32xf32>, vector<4x8x32xf32> -> vector<4x8x32xf32>
    "tpu.trace_stop"() : () -> ()
    %cst_82 = arith.constant dense<0.000000e+00> : vector<8x32xf32>
    %187 = vector.multi_reduction <add>, %186, %cst_82 [0] : vector<4x8x32xf32> to vector<8x32xf32>
    %c1_83 = arith.constant 1 : index
    %c0_84 = arith.constant 0 : index
    %c0_85 = arith.constant 0 : index
    %188 = vector.load %arg6[%c1_83, %c0_84, %c0_85] : memref<2x1x32xf32, #tpu.memory_space<vmem>>, vector<1x1x32xf32>
    %189 = vector.shape_cast %188 : vector<1x1x32xf32> to vector<1x32xf32>
    %190 = vector.broadcast %189 : vector<1x32xf32> to vector<8x32xf32>
    %191 = arith.addf %187, %190 : vector<8x32xf32>
    %192 = arith.addf %130, %191 : vector<8x32xf32>
    %c1_86 = arith.constant 1 : index
    %c0_87 = arith.constant 0 : index
    %c0_88 = arith.constant 0 : index
    %193 = vector.load %arg7[%c1_86, %c0_87, %c0_88] : memref<2x1x32xf32, #tpu.memory_space<vmem>>, vector<1x1x32xf32>
    %194 = vector.shape_cast %193 : vector<1x1x32xf32> to vector<1x32xf32>
    %c1_89 = arith.constant 1 : index
    %c0_90 = arith.constant 0 : index
    %c0_91 = arith.constant 0 : index
    %195 = vector.load %arg8[%c1_89, %c0_90, %c0_91] : memref<2x1x32xf32, #tpu.memory_space<vmem>>, vector<1x1x32xf32>
    %196 = vector.shape_cast %195 : vector<1x1x32xf32> to vector<1x32xf32>
    %cst_92 = arith.constant dense<0.000000e+00> : vector<8xf32>
    %197 = vector.multi_reduction <add>, %192, %cst_92 [1] : vector<8x32xf32> to vector<8xf32>
    %198 = vector.shape_cast %197 : vector<8xf32> to vector<8x1xf32>
    %cst_93 = arith.constant 3.200000e+01 : f32
    %199 = vector.broadcast %cst_93 : f32 to vector<8x1xf32>
    %200 = arith.divf %198, %199 : vector<8x1xf32>
    %201 = vector.broadcast %200 : vector<8x1xf32> to vector<8x32xf32>
    %202 = arith.subf %192, %201 : vector<8x32xf32>
    %203 = arith.mulf %202, %202 : vector<8x32xf32>
    %cst_94 = arith.constant dense<0.000000e+00> : vector<8xf32>
    %204 = vector.multi_reduction <add>, %203, %cst_94 [1] : vector<8x32xf32> to vector<8xf32>
    %205 = vector.shape_cast %204 : vector<8xf32> to vector<8x1xf32>
    %cst_95 = arith.constant 3.200000e+01 : f32
    %206 = vector.broadcast %cst_95 : f32 to vector<8x1xf32>
    %207 = arith.divf %205, %206 : vector<8x1xf32>
    %208 = vector.broadcast %200 : vector<8x1xf32> to vector<8x32xf32>
    %209 = arith.subf %192, %208 : vector<8x32xf32>
    %cst_96 = arith.constant 9.99999974E-6 : f32
    %210 = vector.broadcast %cst_96 : f32 to vector<8x1xf32>
    %211 = arith.addf %207, %210 : vector<8x1xf32>
    %212 = math.rsqrt %211 : vector<8x1xf32>
    %213 = vector.broadcast %212 : vector<8x1xf32> to vector<8x32xf32>
    %214 = arith.mulf %209, %213 : vector<8x32xf32>
    %215 = vector.broadcast %194 : vector<1x32xf32> to vector<8x32xf32>
    %216 = arith.mulf %214, %215 : vector<8x32xf32>
    %217 = vector.broadcast %196 : vector<1x32xf32> to vector<8x32xf32>
    %218 = arith.addf %216, %217 : vector<8x32xf32>
    %c1_97 = arith.constant 1 : index
    %c0_98 = arith.constant 0 : index
    %c0_99 = arith.constant 0 : index
    %219 = vector.load %arg9[%c1_97, %c0_98, %c0_99] : memref<2x32x32xf32, #tpu.memory_space<vmem>>, vector<1x32x32xf32>
    %220 = vector.shape_cast %219 : vector<1x32x32xf32> to vector<32x32xf32>
    %cst_100 = arith.constant dense<0.000000e+00> : vector<8x32xf32>
    %221 = tpu.matmul %218, %220, %cst_100 {dimension_numbers = #tpu.dot_dimension_numbers<[1], [0], [0], [1], [0, 0, 1, 1], [], []>} : vector<8x32xf32>, vector<32x32xf32>, vector<8x32xf32> -> vector<8x32xf32>
    %c1_101 = arith.constant 1 : index
    %c0_102 = arith.constant 0 : index
    %c0_103 = arith.constant 0 : index
    %222 = vector.load %arg10[%c1_101, %c0_102, %c0_103] : memref<2x1x32xf32, #tpu.memory_space<vmem>>, vector<1x1x32xf32>
    %223 = vector.shape_cast %222 : vector<1x1x32xf32> to vector<1x32xf32>
    %224 = vector.broadcast %223 : vector<1x32xf32> to vector<8x32xf32>
    %225 = arith.addf %221, %224 : vector<8x32xf32>
    %cst_104 = arith.constant 0.000000e+00 : f32
    %226 = vector.broadcast %cst_104 : f32 to vector<8x32xf32>
    %227 = arith.maximumf %225, %226 : vector<8x32xf32>
    %c1_105 = arith.constant 1 : index
    %c0_106 = arith.constant 0 : index
    %c0_107 = arith.constant 0 : index
    %228 = vector.load %arg11[%c1_105, %c0_106, %c0_107] : memref<2x32x32xf32, #tpu.memory_space<vmem>>, vector<1x32x32xf32>
    %229 = vector.shape_cast %228 : vector<1x32x32xf32> to vector<32x32xf32>
    %cst_108 = arith.constant dense<0.000000e+00> : vector<8x32xf32>
    %230 = tpu.matmul %227, %229, %cst_108 {dimension_numbers = #tpu.dot_dimension_numbers<[1], [0], [0], [1], [0, 0, 1, 1], [], []>} : vector<8x32xf32>, vector<32x32xf32>, vector<8x32xf32> -> vector<8x32xf32>
    %c1_109 = arith.constant 1 : index
    %c0_110 = arith.constant 0 : index
    %c0_111 = arith.constant 0 : index
    %231 = vector.load %arg12[%c1_109, %c0_110, %c0_111] : memref<2x1x32xf32, #tpu.memory_space<vmem>>, vector<1x1x32xf32>
    %232 = vector.shape_cast %231 : vector<1x1x32xf32> to vector<1x32xf32>
    %233 = vector.broadcast %232 : vector<1x32xf32> to vector<8x32xf32>
    %234 = arith.addf %230, %233 : vector<8x32xf32>
    %235 = arith.addf %218, %234 : vector<8x32xf32>
    %c1_112 = arith.constant 1 : index
    %c0_113 = arith.constant 0 : index
    %c0_114 = arith.constant 0 : index
    %236 = vector.load %arg13[%c1_112, %c0_113, %c0_114] : memref<2x1x32xf32, #tpu.memory_space<vmem>>, vector<1x1x32xf32>
    %237 = vector.shape_cast %236 : vector<1x1x32xf32> to vector<1x32xf32>
    %c1_115 = arith.constant 1 : index
    %c0_116 = arith.constant 0 : index
    %c0_117 = arith.constant 0 : index
    %238 = vector.load %arg14[%c1_115, %c0_116, %c0_117] : memref<2x1x32xf32, #tpu.memory_space<vmem>>, vector<1x1x32xf32>
    %239 = vector.shape_cast %238 : vector<1x1x32xf32> to vector<1x32xf32>
    %cst_118 = arith.constant dense<0.000000e+00> : vector<8xf32>
    %240 = vector.multi_reduction <add>, %235, %cst_118 [1] : vector<8x32xf32> to vector<8xf32>
    %241 = vector.shape_cast %240 : vector<8xf32> to vector<8x1xf32>
    %cst_119 = arith.constant 3.200000e+01 : f32
    %242 = vector.broadcast %cst_119 : f32 to vector<8x1xf32>
    %243 = arith.divf %241, %242 : vector<8x1xf32>
    %244 = vector.broadcast %243 : vector<8x1xf32> to vector<8x32xf32>
    %245 = arith.subf %235, %244 : vector<8x32xf32>
    %246 = arith.mulf %245, %245 : vector<8x32xf32>
    %cst_120 = arith.constant dense<0.000000e+00> : vector<8xf32>
    %247 = vector.multi_reduction <add>, %246, %cst_120 [1] : vector<8x32xf32> to vector<8xf32>
    %248 = vector.shape_cast %247 : vector<8xf32> to vector<8x1xf32>
    %cst_121 = arith.constant 3.200000e+01 : f32
    %249 = vector.broadcast %cst_121 : f32 to vector<8x1xf32>
    %250 = arith.divf %248, %249 : vector<8x1xf32>
    %251 = vector.broadcast %243 : vector<8x1xf32> to vector<8x32xf32>
    %252 = arith.subf %235, %251 : vector<8x32xf32>
    %cst_122 = arith.constant 9.99999974E-6 : f32
    %253 = vector.broadcast %cst_122 : f32 to vector<8x1xf32>
    %254 = arith.addf %250, %253 : vector<8x1xf32>
    %255 = math.rsqrt %254 : vector<8x1xf32>
    %256 = vector.broadcast %255 : vector<8x1xf32> to vector<8x32xf32>
    %257 = arith.mulf %252, %256 : vector<8x32xf32>
    %258 = vector.broadcast %237 : vector<1x32xf32> to vector<8x32xf32>
    %259 = arith.mulf %257, %258 : vector<8x32xf32>
    %260 = vector.broadcast %239 : vector<1x32xf32> to vector<8x32xf32>
    %261 = arith.addf %259, %260 : vector<8x32xf32>
    %c0_123 = arith.constant 0 : index
    %c1_124 = arith.constant 1 : index
    %c0_125 = arith.constant 0 : index
    %c0_126 = arith.constant 0 : index
    %262 = vector.load %arg15[%c0_123, %c1_124, %c0_125, %c0_126] : memref<1x2x8x32xf32, #tpu.memory_space<vmem>>, vector<1x1x8x32xf32>
    %263 = vector.shape_cast %262 : vector<1x1x8x32xf32> to vector<8x32xf32>
    %264 = vector.shape_cast %261 : vector<8x32xf32> to vector<1x1x8x32xf32>
    tpu.vector_store %arg15[%c0_123, %c1_124, %c0_125, %c0_126], %264 {strides = array<i32>} : memref<1x2x8x32xf32, #tpu.memory_space<vmem>>, vector<1x1x8x32xf32>,
    return
  }
  func.func @transform_0(%arg0: i32) -> (i32, i32, i32) {
    %c0_i32 = arith.constant 0 : i32
    %c0_i32_0 = arith.constant 0 : i32
    %c0_i32_1 = arith.constant 0 : i32
    return %arg0, %c0_i32, %c0_i32_0 : i32, i32, i32
  }
  func.func @transform_1(%arg0: i32) -> (i32, i32, i32) {
    %c0_i32 = arith.constant 0 : i32
    %c0_i32_0 = arith.constant 0 : i32
    %c0_i32_1 = arith.constant 0 : i32
    return %arg0, %c0_i32, %c0_i32_0 : i32, i32, i32
  }
  func.func @transform_2(%arg0: i32) -> (i32, i32, i32) {
    %c0_i32 = arith.constant 0 : i32
    %c0_i32_0 = arith.constant 0 : i32
    %c0_i32_1 = arith.constant 0 : i32
    %c0_i32_2 = arith.constant 0 : i32
    return %c0_i32, %c0_i32_0, %c0_i32_1 : i32, i32, i32
  }
  func.func @transform_3(%arg0: i32) -> (i32, i32, i32) {
    %c0_i32 = arith.constant 0 : i32
    %c0_i32_0 = arith.constant 0 : i32
    %c0_i32_1 = arith.constant 0 : i32
    %c0_i32_2 = arith.constant 0 : i32
    return %c0_i32, %c0_i32_0, %c0_i32_1 : i32, i32, i32
  }
  func.func @transform_4(%arg0: i32) -> (i32, i32, i32, i32) {
    %c0_i32 = arith.constant 0 : i32
    %c0_i32_0 = arith.constant 0 : i32
    %c0_i32_1 = arith.constant 0 : i32
    %c0_i32_2 = arith.constant 0 : i32
    %c0_i32_3 = arith.constant 0 : i32
    return %c0_i32, %c0_i32_0, %c0_i32_1, %c0_i32_2 : i32, i32, i32, i32
  }
  func.func @transform_5(%arg0: i32) -> (i32, i32, i32) {
    %c0_i32 = arith.constant 0 : i32
    %c0_i32_0 = arith.constant 0 : i32
    %c0_i32_1 = arith.constant 0 : i32
    %c0_i32_2 = arith.constant 0 : i32
    return %c0_i32, %c0_i32_0, %c0_i32_1 : i32, i32, i32
  }
  func.func @transform_6(%arg0: i32) -> (i32, i32, i32) {
    %c0_i32 = arith.constant 0 : i32
    %c0_i32_0 = arith.constant 0 : i32
    %c0_i32_1 = arith.constant 0 : i32
    %c0_i32_2 = arith.constant 0 : i32
    return %c0_i32, %c0_i32_0, %c0_i32_1 : i32, i32, i32
  }
  func.func @transform_7(%arg0: i32) -> (i32, i32, i32) {
    %c0_i32 = arith.constant 0 : i32
    %c0_i32_0 = arith.constant 0 : i32
    %c0_i32_1 = arith.constant 0 : i32
    %c0_i32_2 = arith.constant 0 : i32
    return %c0_i32, %c0_i32_0, %c0_i32_1 : i32, i32, i32
  }
  func.func @transform_8(%arg0: i32) -> (i32, i32, i32) {
    %c0_i32 = arith.constant 0 : i32
    %c0_i32_0 = arith.constant 0 : i32
    %c0_i32_1 = arith.constant 0 : i32
    %c0_i32_2 = arith.constant 0 : i32
    return %c0_i32, %c0_i32_0, %c0_i32_1 : i32, i32, i32
  }
  func.func @transform_9(%arg0: i32) -> (i32, i32, i32) {
    %c0_i32 = arith.constant 0 : i32
    %c0_i32_0 = arith.constant 0 : i32
    %c0_i32_1 = arith.constant 0 : i32
    %c0_i32_2 = arith.constant 0 : i32
    return %c0_i32, %c0_i32_0, %c0_i32_1 : i32, i32, i32
  }
  func.func @transform_10(%arg0: i32) -> (i32, i32, i32) {
    %c0_i32 = arith.constant 0 : i32
    %c0_i32_0 = arith.constant 0 : i32
    %c0_i32_1 = arith.constant 0 : i32
    %c0_i32_2 = arith.constant 0 : i32
    return %c0_i32, %c0_i32_0, %c0_i32_1 : i32, i32, i32
  }
  func.func @transform_11(%arg0: i32) -> (i32, i32, i32) {
    %c0_i32 = arith.constant 0 : i32
    %c0_i32_0 = arith.constant 0 : i32
    %c0_i32_1 = arith.constant 0 : i32
    %c0_i32_2 = arith.constant 0 : i32
    return %c0_i32, %c0_i32_0, %c0_i32_1 : i32, i32, i32
  }
  func.func @transform_12(%arg0: i32) -> (i32, i32, i32) {
    %c0_i32 = arith.constant 0 : i32
    %c0_i32_0 = arith.constant 0 : i32
    %c0_i32_1 = arith.constant 0 : i32
    %c0_i32_2 = arith.constant 0 : i32
    return %c0_i32, %c0_i32_0, %c0_i32_1 : i32, i32, i32
  }
  func.func @transform_13(%arg0: i32) -> (i32, i32, i32) {
    %c0_i32 = arith.constant 0 : i32
    %c0_i32_0 = arith.constant 0 : i32
    %c0_i32_1 = arith.constant 0 : i32
    %c0_i32_2 = arith.constant 0 : i32
    return %c0_i32, %c0_i32_0, %c0_i32_1 : i32, i32, i32
  }
  func.func @transform_14(%arg0: i32) -> (i32, i32, i32, i32) {
    %c0_i32 = arith.constant 0 : i32
    %c0_i32_0 = arith.constant 0 : i32
    %c0_i32_1 = arith.constant 0 : i32
    %c0_i32_2 = arith.constant 0 : i32
    return %arg0, %c0_i32, %c0_i32_0, %c0_i32_1 : i32, i32, i32, i32
  }
}

</mosaic_0001>

<llo_original>
// kernel: multi_level_encoder.1
$region0: #{multi_level_encoder.1}
  #allocation0 [shape = 'u32[]', space=smem, size = 0x4, offset = 0x4, fixed_abs, tag = 'smem constant byte address 0x4 - core index']
  #allocation1 [shape = 'u32[72,128]{1,0:T(1,128)}', space=vmem, size = 0x9000, scoped, tag = 'internal scratch']
  %s0 = inlined_call_operand.vmem [shape: f32[2,8,32], index: 0, kind: input, shape index: {}]
  %s1 = inlined_call_operand.vmem [shape: f32[2,1,8], index: 1, kind: input, shape index: {}]
  %s2 = inlined_call_operand.hbm [shape: f32[2,32,96], index: 2, kind: input, shape index: {}]
  %s3 = inlined_call_operand.vmem [shape: f32[2,1,96], index: 3, kind: input, shape index: {}]
  %s4 = inlined_call_operand.hbm [shape: f32[2,4,8,32], index: 4, kind: input, shape index: {}]
  %s5 = inlined_call_operand.vmem [shape: f32[2,1,32], index: 5, kind: input, shape index: {}]
  %s6 = inlined_call_operand.vmem [shape: f32[2,1,32], index: 6, kind: input, shape index: {}]
  %s7 = inlined_call_operand.vmem [shape: f32[2,1,32], index: 7, kind: input, shape index: {}]
  %s8 = inlined_call_operand.hbm [shape: f32[2,32,32], index: 8, kind: input, shape index: {}]
  %s9 = inlined_call_operand.vmem [shape: f32[2,1,32], index: 9, kind: input, shape index: {}]
  %s10 = inlined_call_operand.hbm [shape: f32[2,32,32], index: 10, kind: input, shape index: {}]
  %s11 = inlined_call_operand.vmem [shape: f32[2,1,32], index: 11, kind: input, shape index: {}]
  %s12 = inlined_call_operand.vmem [shape: f32[2,1,32], index: 12, kind: input, shape index: {}]
  %s13 = inlined_call_operand.vmem [shape: f32[2,1,32], index: 13, kind: input, shape index: {}]
  %s14 = inlined_call_operand.hbm [shape: f32[2,2,8,32], index: 14, kind: output, shape index: {}]
  %s15 = sld [smem:[#allocation0]]
  $region105: #{multi_level_encoder.1} parent=0
    _
  %s17 = ssub.s32 1, %s15
  %s18 = scalar_select 0, %s17, %s15
  $region1: #{multi_level_encoder.1} parent=0
    #allocation2 [shape = 'u8[32768]{0}', space=vmem, size = 0x8000, scoped, tag = 'input window, operand 2, single buffered']
    #allocation3 [shape = 's32[2]{0}', space=sflag, size = 0x8, scoped, tag = 'scoped memory for multi_level_encoder.1']
    #allocation4 [shape = 's32[2]{0}', space=sflag, size = 0x8, scoped, tag = 'scoped memory for multi_level_encoder.1']
    #allocation5 [shape = 'u8[32768]{0}', space=vmem, size = 0x8000, scoped, tag = 'input window, operand 4, single buffered']
    #allocation6 [shape = 's32[1]{0}', space=sflag, size = 0x4, scoped, tag = 'scoped memory for multi_level_encoder.1']
    #allocation7 [shape = 'u8[32768]{0}', space=vmem, size = 0x8000, scoped, tag = 'input window, operand 8, single buffered']
    #allocation8 [shape = 'u8[32768]{0}', space=vmem, size = 0x8000, scoped, tag = 'input window, operand 10, single buffered']
    #allocation9 [shape = 's32[1]{0}', space=sflag, size = 0x4, scoped, tag = 'scoped memory for multi_level_encoder.1']
    #allocation10 [shape = 'u8[16384]{0}', space=vmem, size = 0x4000, scoped, tag = 'output window, operand 0']
    %19 = vsyncpa [#allocation3], 0
    %20 = vsyncpa [#allocation6], 0
    %21 = vsyncpa [#allocation9], 0
    %22 = vsyncpa [#allocation4], 0
    %s23 = scalar_lea.sflag [#allocation4], 1
    %24 = vsyncpa %s23, 0
    loop: start=0, step=1, limit=4
    $region2: #{multi_level_encoder.1} parent=1 // loop_pre_header
      _
    $region3: #{multi_level_encoder.1} parent=1 // loop_header
      %s26 = sphi 0, %s30
      %p27 = scmp.ge.s32.totalorder %s26, 4
      %s36 = sphi 0, %s38
      %s39 = sphi 0, %s36
      %s40 = sphi 0, %s39
      %s56 = sphi 0, %s40
      %s62 = sphi 0, %s64
      %s65 = sphi 0, %s62
      %s66 = sphi 0, %s65
      %s82 = sphi 0, %s66
      %s86 = sphi 0, %s86
      %s88 = sphi 0, %s86
      %s89 = sphi 0, %s88
      %s103 = sphi 0, %s89
      %s107 = sphi 0, %s107
      %s109 = sphi 0, %s107
      %s110 = sphi 0, %s109
      %s124 = sphi 0, %s110
      %s128 = sphi 0, %s128
      %s130 = sphi 0, %s128
      %s131 = sphi 0, %s130
      %s145 = sphi 0, %s131
      %s149 = sphi 0, %s149
      %s151 = sphi 0, %s149
      %s152 = sphi 0, %s151
      %s166 = sphi 0, %s152
      %s170 = sphi 0, %s170
      %s172 = sphi 0, %s170
      %s173 = sphi 0, %s172
      %s187 = sphi 0, %s173
      %s191 = sphi 0, %s191
      %s193 = sphi 0, %s191
      %s194 = sphi 0, %s193
      %s208 = sphi 0, %s194
      %s212 = sphi 0, %s212
      %s214 = sphi 0, %s212
      %s215 = sphi 0, %s214
      %s229 = sphi 0, %s215
      %s233 = sphi 0, %s233
      %s235 = sphi 0, %s233
      %s236 = sphi 0, %s235
      %s250 = sphi 0, %s236
      %s254 = sphi 0, %s254
      %s256 = sphi 0, %s254
      %s257 = sphi 0, %s256
      %s271 = sphi 0, %s257
      %s275 = sphi 0, %s275
      %s277 = sphi 0, %s275
      %s278 = sphi 0, %s277
      %s292 = sphi 0, %s278
      %s296 = sphi 0, %s296
      %s298 = sphi 0, %s296
      %s299 = sphi 0, %s298
      %s313 = sphi 0, %s299
      %s317 = sphi 0, %s317
      %s319 = sphi 0, %s317
      %s320 = sphi 0, %s319
      %s334 = sphi 0, %s320
      %s340 = sphi 0, %s342
      %s343 = sphi 0, %s340
      %s344 = sphi 0, %s343
      %s360 = sphi 0, %s344
    $region4: #{multi_level_encoder.1} parent=1 // loop_header_branch
      %29 = sbr.rel (%p27) target = $region8
    $region5: #{multi_level_encoder.1} parent=1 // loop_body
      %s31 = ssub.s32 %s26, 1
      %s32 = ssub.s32 %s26, 2
      %s33 = sadd.s32 %s26, 1
      %s34 = ssub.s32 %s26, %s33
      %p35 = scmp.eq.s32.totalorder %s34, 0
      %s37 = sadd.s32 %s36, 1
      %s38 = scalar_select %p35, %s36, %s37
      %p41 = pneg %p35
      %p42 = scmp.eq.s32.totalorder %s26, 1
      %p43 = por %p41, %p42
      %p44 = scmp.ne.s32.totalorder %s36, %s39
      %p45 = scmp.eq.s32.totalorder %s26, 0
      %p46 = por %p44, %p45
      %p47 = scmp.ne.s32.totalorder %s36, %s39
      %p48 = scmp.eq.s32.totalorder %s31, 1
      %p49 = por %p47, %p48
      %p50 = scmp.ne.s32.totalorder %s39, %s40
      %p51 = scmp.eq.s32.totalorder %s31, 0
      %p52 = por %p50, %p51
      %p53 = scmp.ne.s32.totalorder %s39, %s40
      %p54 = scmp.eq.s32.totalorder %s32, 1
      %p55 = por %p53, %p54
      %p57 = scmp.ne.s32.totalorder %s40, %s56
      %p58 = scmp.eq.s32.totalorder %s32, 0
      %p59 = por %p57, %p58
      %s60 = ssub.s32 %s26, %s33
      %p61 = scmp.eq.s32.totalorder %s60, 0
      %s63 = sadd.s32 %s62, 1
      %s64 = scalar_select %p61, %s62, %s63
      %p67 = pneg %p61
      %p68 = scmp.eq.s32.totalorder %s26, 1
      %p69 = por %p67, %p68
      %p70 = scmp.ne.s32.totalorder %s62, %s65
      %p71 = scmp.eq.s32.totalorder %s26, 0
      %p72 = por %p70, %p71
      %p73 = scmp.ne.s32.totalorder %s62, %s65
      %p74 = scmp.eq.s32.totalorder %s31, 1
      %p75 = por %p73, %p74
      %p76 = scmp.ne.s32.totalorder %s65, %s66
      %p77 = scmp.eq.s32.totalorder %s31, 0
      %p78 = por %p76, %p77
      %p79 = scmp.ne.s32.totalorder %s65, %s66
      %p80 = scmp.eq.s32.totalorder %s32, 1
      %p81 = por %p79, %p80
      %p83 = scmp.ne.s32.totalorder %s66, %s82
      %p84 = scmp.eq.s32.totalorder %s32, 0
      %p85 = por %p83, %p84
      %s87 = sadd.s32 %s86, 1
      %p90 = scmp.eq.s32.totalorder %s26, 1
      %p91 = scmp.ne.s32.totalorder %s86, %s88
      %p92 = scmp.eq.s32.totalorder %s26, 0
      %p93 = por %p91, %p92
      %p94 = scmp.ne.s32.totalorder %s86, %s88
      %p95 = scmp.eq.s32.totalorder %s31, 1
      %p96 = por %p94, %p95
      %p97 = scmp.ne.s32.totalorder %s88, %s89
      %p98 = scmp.eq.s32.totalorder %s31, 0
      %p99 = por %p97, %p98
      %p100 = scmp.ne.s32.totalorder %s88, %s89
      %p101 = scmp.eq.s32.totalorder %s32, 1
      %p102 = por %p100, %p101
      %p104 = scmp.ne.s32.totalorder %s89, %s103
      %p105 = scmp.eq.s32.totalorder %s32, 0
      %p106 = por %p104, %p105
      %s108 = sadd.s32 %s107, 1
      %p111 = scmp.eq.s32.totalorder %s26, 1
      %p112 = scmp.ne.s32.totalorder %s107, %s109
      %p113 = scmp.eq.s32.totalorder %s26, 0
      %p114 = por %p112, %p113
      %p115 = scmp.ne.s32.totalorder %s107, %s109
      %p116 = scmp.eq.s32.totalorder %s31, 1
      %p117 = por %p115, %p116
      %p118 = scmp.ne.s32.totalorder %s109, %s110
      %p119 = scmp.eq.s32.totalorder %s31, 0
      %p120 = por %p118, %p119
      %p121 = scmp.ne.s32.totalorder %s109, %s110
      %p122 = scmp.eq.s32.totalorder %s32, 1
      %p123 = por %p121, %p122
      %p125 = scmp.ne.s32.totalorder %s110, %s124
      %p126 = scmp.eq.s32.totalorder %s32, 0
      %p127 = por %p125, %p126
      %s129 = sadd.s32 %s128, 1
      %p132 = scmp.eq.s32.totalorder %s26, 1
      %p133 = scmp.ne.s32.totalorder %s128, %s130
      %p134 = scmp.eq.s32.totalorder %s26, 0
      %p135 = por %p133, %p134
      %p136 = scmp.ne.s32.totalorder %s128, %s130
      %p137 = scmp.eq.s32.totalorder %s31, 1
      %p138 = por %p136, %p137
      %p139 = scmp.ne.s32.totalorder %s130, %s131
      %p140 = scmp.eq.s32.totalorder %s31, 0
      %p141 = por %p139, %p140
      %p142 = scmp.ne.s32.totalorder %s130, %s131
      %p143 = scmp.eq.s32.totalorder %s32, 1
      %p144 = por %p142, %p143
      %p146 = scmp.ne.s32.totalorder %s131, %s145
      %p147 = scmp.eq.s32.totalorder %s32, 0
      %p148 = por %p146, %p147
      %s150 = sadd.s32 %s149, 1
      %p153 = scmp.eq.s32.totalorder %s26, 1
      %p154 = scmp.ne.s32.totalorder %s149, %s151
      %p155 = scmp.eq.s32.totalorder %s26, 0
      %p156 = por %p154, %p155
      %p157 = scmp.ne.s32.totalorder %s149, %s151
      %p158 = scmp.eq.s32.totalorder %s31, 1
      %p159 = por %p157, %p158
      %p160 = scmp.ne.s32.totalorder %s151, %s152
      %p161 = scmp.eq.s32.totalorder %s31, 0
      %p162 = por %p160, %p161
      %p163 = scmp.ne.s32.totalorder %s151, %s152
      %p164 = scmp.eq.s32.totalorder %s32, 1
      %p165 = por %p163, %p164
      %p167 = scmp.ne.s32.totalorder %s152, %s166
      %p168 = scmp.eq.s32.totalorder %s32, 0
      %p169 = por %p167, %p168
      %s171 = sadd.s32 %s170, 1
      %p174 = scmp.eq.s32.totalorder %s26, 1
      %p175 = scmp.ne.s32.totalorder %s170, %s172
      %p176 = scmp.eq.s32.totalorder %s26, 0
      %p177 = por %p175, %p176
      %p178 = scmp.ne.s32.totalorder %s170, %s172
      %p179 = scmp.eq.s32.totalorder %s31, 1
      %p180 = por %p178, %p179
      %p181 = scmp.ne.s32.totalorder %s172, %s173
      %p182 = scmp.eq.s32.totalorder %s31, 0
      %p183 = por %p181, %p182
      %p184 = scmp.ne.s32.totalorder %s172, %s173
      %p185 = scmp.eq.s32.totalorder %s32, 1
      %p186 = por %p184, %p185
      %p188 = scmp.ne.s32.totalorder %s173, %s187
      %p189 = scmp.eq.s32.totalorder %s32, 0
      %p190 = por %p188, %p189
      %s192 = sadd.s32 %s191, 1
      %p195 = scmp.eq.s32.totalorder %s26, 1
      %p196 = scmp.ne.s32.totalorder %s191, %s193
      %p197 = scmp.eq.s32.totalorder %s26, 0
      %p198 = por %p196, %p197
      %p199 = scmp.ne.s32.totalorder %s191, %s193
      %p200 = scmp.eq.s32.totalorder %s31, 1
      %p201 = por %p199, %p200
      %p202 = scmp.ne.s32.totalorder %s193, %s194
      %p203 = scmp.eq.s32.totalorder %s31, 0
      %p204 = por %p202, %p203
      %p205 = scmp.ne.s32.totalorder %s193, %s194
      %p206 = scmp.eq.s32.totalorder %s32, 1
      %p207 = por %p205, %p206
      %p209 = scmp.ne.s32.totalorder %s194, %s208
      %p210 = scmp.eq.s32.totalorder %s32, 0
      %p211 = por %p209, %p210
      %s213 = sadd.s32 %s212, 1
      %p216 = scmp.eq.s32.totalorder %s26, 1
      %p217 = scmp.ne.s32.totalorder %s212, %s214
      %p218 = scmp.eq.s32.totalorder %s26, 0
      %p219 = por %p217, %p218
      %p220 = scmp.ne.s32.totalorder %s212, %s214
      %p221 = scmp.eq.s32.totalorder %s31, 1
      %p222 = por %p220, %p221
      %p223 = scmp.ne.s32.totalorder %s214, %s215
      %p224 = scmp.eq.s32.totalorder %s31, 0
      %p225 = por %p223, %p224
      %p226 = scmp.ne.s32.totalorder %s214, %s215
      %p227 = scmp.eq.s32.totalorder %s32, 1
      %p228 = por %p226, %p227
      %p230 = scmp.ne.s32.totalorder %s215, %s229
      %p231 = scmp.eq.s32.totalorder %s32, 0
      %p232 = por %p230, %p231
      %s234 = sadd.s32 %s233, 1
      %p237 = scmp.eq.s32.totalorder %s26, 1
      %p238 = scmp.ne.s32.totalorder %s233, %s235
      %p239 = scmp.eq.s32.totalorder %s26, 0
      %p240 = por %p238, %p239
      %p241 = scmp.ne.s32.totalorder %s233, %s235
      %p242 = scmp.eq.s32.totalorder %s31, 1
      %p243 = por %p241, %p242
      %p244 = scmp.ne.s32.totalorder %s235, %s236
      %p245 = scmp.eq.s32.totalorder %s31, 0
      %p246 = por %p244, %p245
      %p247 = scmp.ne.s32.totalorder %s235, %s236
      %p248 = scmp.eq.s32.totalorder %s32, 1
      %p249 = por %p247, %p248
      %p251 = scmp.ne.s32.totalorder %s236, %s250
      %p252 = scmp.eq.s32.totalorder %s32, 0
      %p253 = por %p251, %p252
      %s255 = sadd.s32 %s254, 1
      %p258 = scmp.eq.s32.totalorder %s26, 1
      %p259 = scmp.ne.s32.totalorder %s254, %s256
      %p260 = scmp.eq.s32.totalorder %s26, 0
      %p261 = por %p259, %p260
      %p262 = scmp.ne.s32.totalorder %s254, %s256
      %p263 = scmp.eq.s32.totalorder %s31, 1
      %p264 = por %p262, %p263
      %p265 = scmp.ne.s32.totalorder %s256, %s257
      %p266 = scmp.eq.s32.totalorder %s31, 0
      %p267 = por %p265, %p266
      %p268 = scmp.ne.s32.totalorder %s256, %s257
      %p269 = scmp.eq.s32.totalorder %s32, 1
      %p270 = por %p268, %p269
      %p272 = scmp.ne.s32.totalorder %s257, %s271
      %p273 = scmp.eq.s32.totalorder %s32, 0
      %p274 = por %p272, %p273
      %s276 = sadd.s32 %s275, 1
      %p279 = scmp.eq.s32.totalorder %s26, 1
      %p280 = scmp.ne.s32.totalorder %s275, %s277
      %p281 = scmp.eq.s32.totalorder %s26, 0
      %p282 = por %p280, %p281
      %p283 = scmp.ne.s32.totalorder %s275, %s277
      %p284 = scmp.eq.s32.totalorder %s31, 1
      %p285 = por %p283, %p284
      %p286 = scmp.ne.s32.totalorder %s277, %s278
      %p287 = scmp.eq.s32.totalorder %s31, 0
      %p288 = por %p286, %p287
      %p289 = scmp.ne.s32.totalorder %s277, %s278
      %p290 = scmp.eq.s32.totalorder %s32, 1
      %p291 = por %p289, %p290
      %p293 = scmp.ne.s32.totalorder %s278, %s292
      %p294 = scmp.eq.s32.totalorder %s32, 0
      %p295 = por %p293, %p294
      %s297 = sadd.s32 %s296, 1
      %p300 = scmp.eq.s32.totalorder %s26, 1
      %p301 = scmp.ne.s32.totalorder %s296, %s298
      %p302 = scmp.eq.s32.totalorder %s26, 0
      %p303 = por %p301, %p302
      %p304 = scmp.ne.s32.totalorder %s296, %s298
      %p305 = scmp.eq.s32.totalorder %s31, 1
      %p306 = por %p304, %p305
      %p307 = scmp.ne.s32.totalorder %s298, %s299
      %p308 = scmp.eq.s32.totalorder %s31, 0
      %p309 = por %p307, %p308
      %p310 = scmp.ne.s32.totalorder %s298, %s299
      %p311 = scmp.eq.s32.totalorder %s32, 1
      %p312 = por %p310, %p311
      %p314 = scmp.ne.s32.totalorder %s299, %s313
      %p315 = scmp.eq.s32.totalorder %s32, 0
      %p316 = por %p314, %p315
      %s318 = sadd.s32 %s317, 1
      %p321 = scmp.eq.s32.totalorder %s26, 1
      %p322 = scmp.ne.s32.totalorder %s317, %s319
      %p323 = scmp.eq.s32.totalorder %s26, 0
      %p324 = por %p322, %p323
      %p325 = scmp.ne.s32.totalorder %s317, %s319
      %p326 = scmp.eq.s32.totalorder %s31, 1
      %p327 = por %p325, %p326
      %p328 = scmp.ne.s32.totalorder %s319, %s320
      %p329 = scmp.eq.s32.totalorder %s31, 0
      %p330 = por %p328, %p329
      %p331 = scmp.ne.s32.totalorder %s319, %s320
      %p332 = scmp.eq.s32.totalorder %s32, 1
      %p333 = por %p331, %p332
      %p335 = scmp.ne.s32.totalorder %s320, %s334
      %p336 = scmp.eq.s32.totalorder %s32, 0
      %p337 = por %p335, %p336
      %s338 = ssub.s32 %s26, %s33
      %p339 = scmp.eq.s32.totalorder %s338, 0
      %s341 = sadd.s32 %s340, 1
      %s342 = scalar_select %p339, %s340, %s341
      %p345 = pneg %p339
      %p346 = scmp.eq.s32.totalorder %s26, 1
      %p347 = por %p345, %p346
      %p348 = scmp.ne.s32.totalorder %s340, %s343
      %p349 = scmp.eq.s32.totalorder %s26, 0
      %p350 = por %p348, %p349
      %p351 = scmp.ne.s32.totalorder %s340, %s343
      %p352 = scmp.eq.s32.totalorder %s31, 1
      %p353 = por %p351, %p352
      %p354 = scmp.ne.s32.totalorder %s343, %s344
      %p355 = scmp.eq.s32.totalorder %s31, 0
      %p356 = por %p354, %p355
      %p357 = scmp.ne.s32.totalorder %s343, %s344
      %p358 = scmp.eq.s32.totalorder %s32, 1
      %p359 = por %p357, %p358
      %p361 = scmp.ne.s32.totalorder %s344, %s360
      %p362 = scmp.eq.s32.totalorder %s32, 0
      %p363 = por %p361, %p362
      %p364 = scmp.le.s32.totalorder 1, %s26
      %p365 = scmp.lt.s32.totalorder %s26, 3
      %p366 = pnand %p364, %p365
      %p367 = pneg %p366
      // Predicated region
      $region9: #{multi_level_encoder.1} parent=5 // pred_check
        _
      $region10: #{multi_level_encoder.1} parent=5 // pred_check_branch
        %369 = sbr.rel (%p366) target = $region12
      $region11: #{multi_level_encoder.1} parent=5 // pred_region
        %s370 = ssub.s32 %s26, 1
        // Predicated region
        $region13: #{multi_level_encoder.1} parent=11 // pred_check
          %p371 = pneg %p99
        $region14: #{multi_level_encoder.1} parent=11 // pred_check_branch
          %373 = sbr.rel (%p371) target = $region16
        $region15: #{multi_level_encoder.1} parent=11 // pred_region
          %375 = vsyncadd [#allocation3], 0
          %s376 = sshll.u32 %s2, 4
          %s377 = int_to_ptr.hbm [resolvable:$true] %s376
          %s378 = sshll.u32 [#allocation2], 4
          %s379 = int_to_ptr.vmem [resolvable:$true] %s378
          %384 = dma.hbm_to_vmem [thread:$0]  %s377, 1024, %s379, [#allocation3], 128, 128, 8
        $region16: #{multi_level_encoder.1} parent=11 // pred_fallthru
          _
        // Predicated region
        $region17: #{multi_level_encoder.1} parent=11 // pred_check
          %p385 = pneg %p120
        $region18: #{multi_level_encoder.1} parent=11 // pred_check_branch
          %387 = sbr.rel (%p385) target = $region20
        $region19: #{multi_level_encoder.1} parent=11 // pred_region
          _
        $region20: #{multi_level_encoder.1} parent=11 // pred_fallthru
          _
        // Predicated region
        $region21: #{multi_level_encoder.1} parent=11 // pred_check
          %p388 = pneg %p141
        $region22: #{multi_level_encoder.1} parent=11 // pred_check_branch
          %390 = sbr.rel (%p388) target = $region24
        $region23: #{multi_level_encoder.1} parent=11 // pred_region
          %392 = vsyncadd [#allocation6], 0
          %s393 = sshll.u32 %s4, 4
          %s394 = int_to_ptr.hbm [resolvable:$true] %s393
          %s395 = sshll.u32 [#allocation5], 4
          %s396 = int_to_ptr.vmem [resolvable:$true] %s395
          %401 = dma.hbm_to_vmem [thread:$0]  %s394, 1024, %s396, [#allocation6], 128, 128, 8
        $region24: #{multi_level_encoder.1} parent=11 // pred_fallthru
          _
        // Predicated region
        $region25: #{multi_level_encoder.1} parent=11 // pred_check
          %p402 = pneg %p162
        $region26: #{multi_level_encoder.1} parent=11 // pred_check_branch
          %404 = sbr.rel (%p402) target = $region28
        $region27: #{multi_level_encoder.1} parent=11 // pred_region
          _
        $region28: #{multi_level_encoder.1} parent=11 // pred_fallthru
          _
        // Predicated region
        $region29: #{multi_level_encoder.1} parent=11 // pred_check
          %p405 = pneg %p183
        $region30: #{multi_level_encoder.1} parent=11 // pred_check_branch
          %407 = sbr.rel (%p405) target = $region32
        $region31: #{multi_level_encoder.1} parent=11 // pred_region
          _
        $region32: #{multi_level_encoder.1} parent=11 // pred_fallthru
          _
        // Predicated region
        $region33: #{multi_level_encoder.1} parent=11 // pred_check
          %p408 = pneg %p204
        $region34: #{multi_level_encoder.1} parent=11 // pred_check_branch
          %410 = sbr.rel (%p408) target = $region36
        $region35: #{multi_level_encoder.1} parent=11 // pred_region
          _
        $region36: #{multi_level_encoder.1} parent=11 // pred_fallthru
          _
        // Predicated region
        $region37: #{multi_level_encoder.1} parent=11 // pred_check
          %p411 = pneg %p225
        $region38: #{multi_level_encoder.1} parent=11 // pred_check_branch
          %413 = sbr.rel (%p411) target = $region40
        $region39: #{multi_level_encoder.1} parent=11 // pred_region
          %415 = vsyncadd [#allocation6], 0
          %s416 = sshll.u32 %s8, 4
          %s417 = int_to_ptr.hbm [resolvable:$true] %s416
          %s418 = sshll.u32 [#allocation7], 4
          %s419 = int_to_ptr.vmem [resolvable:$true] %s418
          %424 = dma.hbm_to_vmem [thread:$0]  %s417, 1024, %s419, [#allocation6], 128, 128, 8
        $region40: #{multi_level_encoder.1} parent=11 // pred_fallthru
          _
        // Predicated region
        $region41: #{multi_level_encoder.1} parent=11 // pred_check
          %p425 = pneg %p246
        $region42: #{multi_level_encoder.1} parent=11 // pred_check_branch
          %427 = sbr.rel (%p425) target = $region44
        $region43: #{multi_level_encoder.1} parent=11 // pred_region
          _
        $region44: #{multi_level_encoder.1} parent=11 // pred_fallthru
          _
        // Predicated region
        $region45: #{multi_level_encoder.1} parent=11 // pred_check
          %p428 = pneg %p267
        $region46: #{multi_level_encoder.1} parent=11 // pred_check_branch
          %430 = sbr.rel (%p428) target = $region48
        $region47: #{multi_level_encoder.1} parent=11 // pred_region
          %432 = vsyncadd [#allocation9], 0
          %s433 = sshll.u32 %s10, 4
          %s434 = int_to_ptr.hbm [resolvable:$true] %s433
          %s435 = sshll.u32 [#allocation8], 4
          %s436 = int_to_ptr.vmem [resolvable:$true] %s435
          %441 = dma.hbm_to_vmem [thread:$0]  %s434, 1024, %s436, [#allocation9], 128, 128, 8
        $region48: #{multi_level_encoder.1} parent=11 // pred_fallthru
          _
        // Predicated region
        $region49: #{multi_level_encoder.1} parent=11 // pred_check
          %p442 = pneg %p288
        $region50: #{multi_level_encoder.1} parent=11 // pred_check_branch
          %444 = sbr.rel (%p442) target = $region52
        $region51: #{multi_level_encoder.1} parent=11 // pred_region
          _
        $region52: #{multi_level_encoder.1} parent=11 // pred_fallthru
          _
        // Predicated region
        $region53: #{multi_level_encoder.1} parent=11 // pred_check
          %p445 = pneg %p309
        $region54: #{multi_level_encoder.1} parent=11 // pred_check_branch
          %447 = sbr.rel (%p445) target = $region56
        $region55: #{multi_level_encoder.1} parent=11 // pred_region
          _
        $region56: #{multi_level_encoder.1} parent=11 // pred_fallthru
          _
        // Predicated region
        $region57: #{multi_level_encoder.1} parent=11 // pred_check
          %p448 = pneg %p330
        $region58: #{multi_level_encoder.1} parent=11 // pred_check_branch
          %450 = sbr.rel (%p448) target = $region60
        $region59: #{multi_level_encoder.1} parent=11 // pred_region
          _
        $region60: #{multi_level_encoder.1} parent=11 // pred_fallthru
          _
      $region12: #{multi_level_encoder.1} parent=5 // pred_fallthru
        _
      %p451 = scmp.lt.s32.totalorder %s26, 2
      // Predicated region
      $region61: #{multi_level_encoder.1} parent=5 // pred_check
        %p452 = pneg %p451
      $region62: #{multi_level_encoder.1} parent=5 // pred_check_branch
        %454 = sbr.rel (%p452) target = $region64
      $region63: #{multi_level_encoder.1} parent=5 // pred_region
        // Predicated region
        $region65: #{multi_level_encoder.1} parent=63 // pred_check
          %p455 = pneg %p46
        $region66: #{multi_level_encoder.1} parent=63 // pred_check_branch
          %457 = sbr.rel (%p455) target = $region68
        $region67: #{multi_level_encoder.1} parent=63 // pred_region
          %p458 = scmp.lt.s32.totalorder %s26, 1
          %s459 = scalar_select %p458, %s26, 1
          %s460 = smul.addr %s459, 8
          %s461 = scalar_lea.vmem %s0, %s460
        $region68: #{multi_level_encoder.1} parent=63 // pred_fallthru
          _
        // Predicated region
        $region69: #{multi_level_encoder.1} parent=63 // pred_check
          %p462 = pneg %p72
        $region70: #{multi_level_encoder.1} parent=63 // pred_check_branch
          %464 = sbr.rel (%p462) target = $region72
        $region71: #{multi_level_encoder.1} parent=63 // pred_region
          %p465 = scmp.lt.s32.totalorder %s26, 1
          %s466 = scalar_select %p465, %s26, 1
          %s467 = scalar_lea.vmem %s1, %s466
        $region72: #{multi_level_encoder.1} parent=63 // pred_fallthru
          _
      $region64: #{multi_level_encoder.1} parent=5 // pred_fallthru
        _
      %p468 = scmp.le.s32.totalorder 1, %s26
      %p469 = scmp.lt.s32.totalorder %s26, 3
      %p470 = pnand %p468, %p469
      %p471 = pneg %p470
      // Predicated region
      $region73: #{multi_level_encoder.1} parent=5 // pred_check
        _
      $region74: #{multi_level_encoder.1} parent=5 // pred_check_branch
        %473 = sbr.rel (%p470) target = $region76
      $region75: #{multi_level_encoder.1} parent=5 // pred_region
        %s474 = ssub.s32 %s26, 1
        // Predicated region
        $region77: #{multi_level_encoder.1} parent=75 // pred_check
          %p475 = pneg %p99
        $region78: #{multi_level_encoder.1} parent=75 // pred_check_branch
          %477 = sbr.rel (%p475) target = $region80
        $region79: #{multi_level_encoder.1} parent=75 // pred_region
          %479 = dma.done [#allocation3], 1024
        $region80: #{multi_level_encoder.1} parent=75 // pred_fallthru
          _
        // Predicated region
        $region81: #{multi_level_encoder.1} parent=75 // pred_check
          %p480 = pneg %p141
        $region82: #{multi_level_encoder.1} parent=75 // pred_check_branch
          %482 = sbr.rel (%p480) target = $region84
        $region83: #{multi_level_encoder.1} parent=75 // pred_region
          %484 = dma.done [#allocation6], 1024
        $region84: #{multi_level_encoder.1} parent=75 // pred_fallthru
          _
        // Predicated region
        $region85: #{multi_level_encoder.1} parent=75 // pred_check
          %p485 = pneg %p225
        $region86: #{multi_level_encoder.1} parent=75 // pred_check_branch
          %487 = sbr.rel (%p485) target = $region88
        $region87: #{multi_level_encoder.1} parent=75 // pred_region
          %489 = dma.done [#allocation6], 1024
        $region88: #{multi_level_encoder.1} parent=75 // pred_fallthru
          _
        // Predicated region
        $region89: #{multi_level_encoder.1} parent=75 // pred_check
          %p490 = pneg %p267
        $region90: #{multi_level_encoder.1} parent=75 // pred_check_branch
          %492 = sbr.rel (%p490) target = $region92
        $region91: #{multi_level_encoder.1} parent=75 // pred_region
          %494 = dma.done [#allocation9], 1024
        $region92: #{multi_level_encoder.1} parent=75 // pred_fallthru
          _
        %p495 = scmp.lt.s32.totalorder %s31, 1
        %s496 = scalar_select %p495, %s31, 1
        %s497 = smul.addr %s496, 8
        %s498 = scalar_lea.vmem %s0, %s497
        %p499 = pneg %p52
        %p500 = pneg %p49
        %p501 = scmp.lt.s32.totalorder %s31, 1
        %s502 = scalar_select %p501, %s31, 1
        %s503 = scalar_lea.vmem %s1, %s502
        %p504 = pneg %p78
        %p505 = pneg %p75
        %p506 = pneg %p99
        %p507 = pneg %p96
        %p508 = pneg %p120
        %p509 = pneg %p117
        %p510 = pneg %p141
        %p511 = pneg %p138
        %p512 = pneg %p162
        %p513 = pneg %p159
        %p514 = pneg %p183
        %p515 = pneg %p180
        %p516 = pneg %p204
        %p517 = pneg %p201
        %p518 = pneg %p225
        %p519 = pneg %p222
        %p520 = pneg %p246
        %p521 = pneg %p243
        %p522 = pneg %p267
        %p523 = pneg %p264
        %p524 = pneg %p288
        %p525 = pneg %p285
        %p526 = pneg %p309
        %p527 = pneg %p306
        %p528 = pneg %p330
        %p529 = pneg %p327
        %p530 = pneg %p356
        %p531 = pneg %p353
        %s532 = sand.u32 %s343, 1
        %s533 = scalar_lea.sflag [#allocation4], %s532
        %s534 = sand.u32 %s343, 1
        %s535 = smul.addr %s534, 16
        %s536 = scalar_lea.vmem [#allocation10], %s535
        %p537 = scmp.lt.s32.totalorder %s31, 1
        %s538 = scalar_select %p537, %s31, 1
        %s539 = smul.addr %s538, 8
        %s540 = scalar_lea.vmem %s0, %s539
        %p541 = scmp.lt.s32.totalorder %s31, 1
        %s542 = scalar_select %p541, %s31, 1
        %s543 = scalar_lea.vmem %s1, %s542
        %v544 = vld [vmem:[%s540] sm:$0xff]
        %v545 = vld [vmem:[%s543] sm:$0x1]
        %v546 = vld [vmem:[#allocation2] sm:$0xff]
        %v547 = vld [vmem:[#allocation2 + $0x8] sm:$0xff]
        %v548 = vld [vmem:[#allocation2 + $0x10] sm:$0xff]
        %v549 = vld [vmem:[#allocation2 + $0x18] sm:$0xff]
        %v550 = vld [vmem:[%s3] sm:$0x1]
        %v552 = vperm.slane %v550, 0
        %vm554 = vcmask 261120
        %v556 = vsel %vm554, %v544, 0
        %558 = vmatpush.msra.mxu0 0.0
        %559 = vmatpush.msra.mxu0 0.0
        %560 = vmatpush.msra.mxu0 0.0
        %561 = vmatpush.msra.mxu0 0.0
        %562 = vmatpush.msra.mxu0 0.0
        %563 = vmatpush.msra.mxu0 0.0
        %564 = vmatpush.msra.mxu0 0.0
        %565 = vmatpush.msra.mxu0 0.0
        %566 = vmatpush.msra.mxu0 0.0
        %567 = vmatpush.msra.mxu0 0.0
        %568 = vmatpush.msra.mxu0 0.0
        %569 = vmatpush.msra.mxu0 0.0
        %570 = vmatpush.msra.mxu0 %v549
        %571 = vmatpush.msra.mxu0 %v548
        %572 = vmatpush.msra.mxu0 %v547
        %573 = vmatpush.msra.mxu0 %v546
        %574 = vmatmul.f32.gmra.mxu0 %v556
        %v575 = vpop.f32.mrf.mxu0
        %v576 = vadd.f32 %v552, %v575
        %577 = vdwg.mxu0
        %579 = vrot.lane.b32.xlu0 %v576, 120
        %v580 = vpop.permute.xlu0 %579
        %581 = vrot.lane.b32.xlu0 %v576, 112
        %v582 = vpop.permute.xlu0 %581
        %583 = vrot.lane.b32.xlu0 %v576, 104
        %v584 = vpop.permute.xlu0 %583
        %585 = vrot.lane.b32.xlu0 %v576, 96
        %v586 = vpop.permute.xlu0 %585
        %vm587 = vcmask 64512
        %v588 = vsel %vm587, %v576, 0
        %v590 = vsel %vm587, %v586, 0
        %592 = vmatpush.xpose.msra.mxu0 0.0
        %593 = vmatpush.xpose.msra.mxu0 0.0
        %594 = vmatpush.xpose.msra.mxu0 0.0
        %595 = vmatpush.xpose.msra.mxu0 0.0
        %596 = vmatpush.xpose.msra.mxu0 0.0
        %597 = vmatpush.xpose.msra.mxu0 0.0
        %598 = vmatpush.xpose.msra.mxu0 0.0
        %599 = vmatpush.xpose.msra.mxu0 0.0
        %600 = vmatpush.xpose.msra.mxu0 0.0
        %601 = vmatpush.xpose.msra.mxu0 0.0
        %602 = vmatpush.xpose.msra.mxu0 0.0
        %603 = vmatpush.xpose.msra.mxu0 0.0
        %604 = vmatpush.xpose.msra.mxu0 0.0
        %605 = vmatpush.xpose.msra.mxu0 0.0
        %606 = vmatpush.xpose.msra.mxu0 0.0
        %607 = vmatpush.xpose.msra.mxu0 %v590
        %608 = vmatmul.f32.gmra.mxu0 %v588
        %v609 = vpop.f32.mrf.mxu0
        %v610 = vadd.f32 0.0, %v609
        %611 = vdwg.mxu0
        %612 = vrot.lane.b32.xlu0 %v580, 96
        %v613 = vpop.permute.xlu0 %612
        %v614 = vsel %vm587, %v580, 0
        %v616 = vsel %vm587, %v613, 0
        %618 = vmatpush.xpose.msra.mxu0 0.0
        %619 = vmatpush.xpose.msra.mxu0 0.0
        %620 = vmatpush.xpose.msra.mxu0 0.0
        %621 = vmatpush.xpose.msra.mxu0 0.0
        %622 = vmatpush.xpose.msra.mxu0 0.0
        %623 = vmatpush.xpose.msra.mxu0 0.0
        %624 = vmatpush.xpose.msra.mxu0 0.0
        %625 = vmatpush.xpose.msra.mxu0 0.0
        %626 = vmatpush.xpose.msra.mxu0 0.0
        %627 = vmatpush.xpose.msra.mxu0 0.0
        %628 = vmatpush.xpose.msra.mxu0 0.0
        %629 = vmatpush.xpose.msra.mxu0 0.0
        %630 = vmatpush.xpose.msra.mxu0 0.0
        %631 = vmatpush.xpose.msra.mxu0 0.0
        %632 = vmatpush.xpose.msra.mxu0 0.0
        %633 = vmatpush.xpose.msra.mxu0 %v616
        %634 = vmatmul.f32.gmra.mxu0 %v614
        %v635 = vpop.f32.mrf.mxu0
        %v636 = vadd.f32 0.0, %v635
        %637 = vdwg.mxu0
        %638 = vrot.lane.b32.xlu0 %v582, 96
        %v639 = vpop.permute.xlu0 %638
        %v640 = vsel %vm587, %v582, 0
        %v642 = vsel %vm587, %v639, 0
        %644 = vmatpush.xpose.msra.mxu0 0.0
        %645 = vmatpush.xpose.msra.mxu0 0.0
        %646 = vmatpush.xpose.msra.mxu0 0.0
        %647 = vmatpush.xpose.msra.mxu0 0.0
        %648 = vmatpush.xpose.msra.mxu0 0.0
        %649 = vmatpush.xpose.msra.mxu0 0.0
        %650 = vmatpush.xpose.msra.mxu0 0.0
        %651 = vmatpush.xpose.msra.mxu0 0.0
        %652 = vmatpush.xpose.msra.mxu0 0.0
        %653 = vmatpush.xpose.msra.mxu0 0.0
        %654 = vmatpush.xpose.msra.mxu0 0.0
        %655 = vmatpush.xpose.msra.mxu0 0.0
        %656 = vmatpush.xpose.msra.mxu0 0.0
        %657 = vmatpush.xpose.msra.mxu0 0.0
        %658 = vmatpush.xpose.msra.mxu0 0.0
        %659 = vmatpush.xpose.msra.mxu0 %v642
        %660 = vmatmul.f32.gmra.mxu0 %v640
        %v661 = vpop.f32.mrf.mxu0
        %v662 = vadd.f32 0.0, %v661
        %663 = vdwg.mxu0
        %664 = vrot.lane.b32.xlu0 %v584, 96
        %v665 = vpop.permute.xlu0 %664
        %v666 = vsel %vm587, %v584, 0
        %v668 = vsel %vm587, %v665, 0
        %670 = vmatpush.xpose.msra.mxu0 0.0
        %671 = vmatpush.xpose.msra.mxu0 0.0
        %672 = vmatpush.xpose.msra.mxu0 0.0
        %673 = vmatpush.xpose.msra.mxu0 0.0
        %674 = vmatpush.xpose.msra.mxu0 0.0
        %675 = vmatpush.xpose.msra.mxu0 0.0
        %676 = vmatpush.xpose.msra.mxu0 0.0
        %677 = vmatpush.xpose.msra.mxu0 0.0
        %678 = vmatpush.xpose.msra.mxu0 0.0
        %679 = vmatpush.xpose.msra.mxu0 0.0
        %680 = vmatpush.xpose.msra.mxu0 0.0
        %681 = vmatpush.xpose.msra.mxu0 0.0
        %682 = vmatpush.xpose.msra.mxu0 0.0
        %683 = vmatpush.xpose.msra.mxu0 0.0
        %684 = vmatpush.xpose.msra.mxu0 0.0
        %685 = vmatpush.xpose.msra.mxu0 %v668
        %686 = vmatmul.f32.gmra.mxu0 %v666
        %v687 = vpop.f32.mrf.mxu0
        %v688 = vadd.f32 0.0, %v687
        %689 = vdwg.mxu0
        %v690 = vmul.f32 %v610, 0.35355338
        %v691 = vmul.f32 %v636, 0.35355338
        %v692 = vmul.f32 %v662, 0.35355338
        %v693 = vmul.f32 %v688, 0.35355338
        %v695 = vperm.slane %v545, 0
        %v697 = vadd.f32 %v690, %v695
        %v698 = vadd.f32 %v691, %v695
        %v699 = vadd.f32 %v692, %v695
        %v700 = vadd.f32 %v693, %v695
        %v701 = vsel %vm587, %v697, -inf
        %702 = vmax.xlane.f32.xlu0 %v701
        %v703 = vpop.xlane.xlu0 %702
        %v704 = vsel %vm587, %v698, -inf
        %705 = vmax.xlane.f32.xlu0 %v704
        %v706 = vpop.xlane.xlu0 %705
        %v707 = vsel %vm587, %v699, -inf
        %708 = vmax.xlane.f32.xlu0 %v707
        %v709 = vpop.xlane.xlu0 %708
        %v710 = vsel %vm587, %v700, -inf
        %711 = vmax.xlane.f32.xlu0 %v710
        %v712 = vpop.xlane.xlu0 %711
        %v713 = vsub.f32 %v697, %v703
        %v714 = vsub.f32 %v698, %v706
        %v715 = vsub.f32 %v699, %v709
        %v716 = vsub.f32 %v700, %v712
        %v717 = vmul.f32 %v713, 1.442695
        %v718 = vpow.pop %v717
        %v719 = vmul.f32 %v714, 1.442695
        %v720 = vpow.pop %v719
        %v721 = vmul.f32 %v715, 1.442695
        %v722 = vpow.pop %v721
        %v723 = vmul.f32 %v716, 1.442695
        %v724 = vpow.pop %v723
        %v725 = vsel %vm587, %v718, 0.0
        %726 = vadd.xlane.f32.xlu0 %v725
        %v727 = vpop.xlane.xlu0 %726
        %v728 = vsel %vm587, %v720, 0.0
        %729 = vadd.xlane.f32.xlu0 %v728
        %v730 = vpop.xlane.xlu0 %729
        %v731 = vsel %vm587, %v722, 0.0
        %732 = vadd.xlane.f32.xlu0 %v731
        %v733 = vpop.xlane.xlu0 %732
        %v734 = vsel %vm587, %v724, 0.0
        %735 = vadd.xlane.f32.xlu0 %v734
        %v736 = vpop.xlane.xlu0 %735
        %v737 = vrcp.pop %v727
        %v738 = vrcp.pop %v730
        %v739 = vrcp.pop %v733
        %v740 = vrcp.pop %v736
        %v741 = vmul.f32 %v718, %v737
        %v742 = vmul.f32 %v720, %v738
        %v743 = vmul.f32 %v722, %v739
        %v744 = vmul.f32 %v724, %v740
        %745 = vrot.lane.b32.xlu0 %v576, 64
        %v746 = vpop.permute.xlu0 %745
        %v749 = vsel %vm587, %v741, 0
        %751 = vmatpush.msra.mxu0 0.0
        %752 = vmatpush.msra.mxu0 0.0
        %753 = vmatpush.msra.mxu0 0.0
        %754 = vmatpush.msra.mxu0 0.0
        %755 = vmatpush.msra.mxu0 0.0
        %756 = vmatpush.msra.mxu0 0.0
        %757 = vmatpush.msra.mxu0 0.0
        %758 = vmatpush.msra.mxu0 0.0
        %759 = vmatpush.msra.mxu0 0.0
        %760 = vmatpush.msra.mxu0 0.0
        %761 = vmatpush.msra.mxu0 0.0
        %762 = vmatpush.msra.mxu0 0.0
        %763 = vmatpush.msra.mxu0 0.0
        %764 = vmatpush.msra.mxu0 0.0
        %765 = vmatpush.msra.mxu0 0.0
        %766 = vmatpush.msra.mxu0 %v746
        %767 = vmatmul.f32.gmra.mxu0 %v749
        %v768 = vpop.f32.mrf.mxu0
        %v769 = vadd.f32 0.0, %v768
        %770 = vdwg.mxu0
        %771 = vrot.lane.b32.xlu0 %v580, 64
        %v772 = vpop.permute.xlu0 %771
        %v775 = vsel %vm587, %v742, 0
        %777 = vmatpush.msra.mxu0 0.0
        %778 = vmatpush.msra.mxu0 0.0
        %779 = vmatpush.msra.mxu0 0.0
        %780 = vmatpush.msra.mxu0 0.0
        %781 = vmatpush.msra.mxu0 0.0
        %782 = vmatpush.msra.mxu0 0.0
        %783 = vmatpush.msra.mxu0 0.0
        %784 = vmatpush.msra.mxu0 0.0
        %785 = vmatpush.msra.mxu0 0.0
        %786 = vmatpush.msra.mxu0 0.0
        %787 = vmatpush.msra.mxu0 0.0
        %788 = vmatpush.msra.mxu0 0.0
        %789 = vmatpush.msra.mxu0 0.0
        %790 = vmatpush.msra.mxu0 0.0
        %791 = vmatpush.msra.mxu0 0.0
        %792 = vmatpush.msra.mxu0 %v772
        %793 = vmatmul.f32.gmra.mxu0 %v775
        %v794 = vpop.f32.mrf.mxu0
        %v795 = vadd.f32 0.0, %v794
        %796 = vdwg.mxu0
        %797 = vrot.lane.b32.xlu0 %v582, 64
        %v798 = vpop.permute.xlu0 %797
        %v801 = vsel %vm587, %v743, 0
        %803 = vmatpush.msra.mxu0 0.0
        %804 = vmatpush.msra.mxu0 0.0
        %805 = vmatpush.msra.mxu0 0.0
        %806 = vmatpush.msra.mxu0 0.0
        %807 = vmatpush.msra.mxu0 0.0
        %808 = vmatpush.msra.mxu0 0.0
        %809 = vmatpush.msra.mxu0 0.0
        %810 = vmatpush.msra.mxu0 0.0
        %811 = vmatpush.msra.mxu0 0.0
        %812 = vmatpush.msra.mxu0 0.0
        %813 = vmatpush.msra.mxu0 0.0
        %814 = vmatpush.msra.mxu0 0.0
        %815 = vmatpush.msra.mxu0 0.0
        %816 = vmatpush.msra.mxu0 0.0
        %817 = vmatpush.msra.mxu0 0.0
        %818 = vmatpush.msra.mxu0 %v798
        %819 = vmatmul.f32.gmra.mxu0 %v801
        %v820 = vpop.f32.mrf.mxu0
        %v821 = vadd.f32 0.0, %v820
        %822 = vdwg.mxu0
        %823 = vrot.lane.b32.xlu0 %v584, 64
        %v824 = vpop.permute.xlu0 %823
        %v827 = vsel %vm587, %v744, 0
        %829 = vmatpush.msra.mxu0 0.0
        %830 = vmatpush.msra.mxu0 0.0
        %831 = vmatpush.msra.mxu0 0.0
        %832 = vmatpush.msra.mxu0 0.0
        %833 = vmatpush.msra.mxu0 0.0
        %834 = vmatpush.msra.mxu0 0.0
        %835 = vmatpush.msra.mxu0 0.0
        %836 = vmatpush.msra.mxu0 0.0
        %837 = vmatpush.msra.mxu0 0.0
        %838 = vmatpush.msra.mxu0 0.0
        %839 = vmatpush.msra.mxu0 0.0
        %840 = vmatpush.msra.mxu0 0.0
        %841 = vmatpush.msra.mxu0 0.0
        %842 = vmatpush.msra.mxu0 0.0
        %843 = vmatpush.msra.mxu0 0.0
        %844 = vmatpush.msra.mxu0 %v824
        %845 = vmatmul.f32.gmra.mxu0 %v827
        %v846 = vpop.f32.mrf.mxu0
        %v847 = vadd.f32 0.0, %v846
        %848 = vdwg.mxu0
        %v849 = vld [vmem:[#allocation5] sm:$0xff]
        %v850 = vld [vmem:[#allocation5 + $0x8] sm:$0xff]
        %v851 = vld [vmem:[#allocation5 + $0x10] sm:$0xff]
        %v852 = vld [vmem:[#allocation5 + $0x18] sm:$0xff]
        %v854 = vsel %vm587, %v769, 0
        %856 = vmatpush.msra.mxu0 0.0
        %857 = vmatpush.msra.mxu0 0.0
        %858 = vmatpush.msra.mxu0 0.0
        %859 = vmatpush.msra.mxu0 0.0
        %860 = vmatpush.msra.mxu0 0.0
        %861 = vmatpush.msra.mxu0 0.0
        %862 = vmatpush.msra.mxu0 0.0
        %863 = vmatpush.msra.mxu0 0.0
        %864 = vmatpush.msra.mxu0 0.0
        %865 = vmatpush.msra.mxu0 0.0
        %866 = vmatpush.msra.mxu0 0.0
        %867 = vmatpush.msra.mxu0 0.0
        %868 = vmatpush.msra.mxu0 0.0
        %869 = vmatpush.msra.mxu0 0.0
        %870 = vmatpush.msra.mxu0 0.0
        %871 = vmatpush.msra.mxu0 %v849
        %872 = vmatmul.f32.gmra.mxu0 %v854
        %v873 = vpop.f32.mrf.mxu0
        %v874 = vadd.f32 0.0, %v873
        %875 = vdwg.mxu0
        %v877 = vsel %vm587, %v795, 0
        %879 = vmatpush.msra.mxu0 0.0
        %880 = vmatpush.msra.mxu0 0.0
        %881 = vmatpush.msra.mxu0 0.0
        %882 = vmatpush.msra.mxu0 0.0
        %883 = vmatpush.msra.mxu0 0.0
        %884 = vmatpush.msra.mxu0 0.0
        %885 = vmatpush.msra.mxu0 0.0
        %886 = vmatpush.msra.mxu0 0.0
        %887 = vmatpush.msra.mxu0 0.0
        %888 = vmatpush.msra.mxu0 0.0
        %889 = vmatpush.msra.mxu0 0.0
        %890 = vmatpush.msra.mxu0 0.0
        %891 = vmatpush.msra.mxu0 0.0
        %892 = vmatpush.msra.mxu0 0.0
        %893 = vmatpush.msra.mxu0 0.0
        %894 = vmatpush.msra.mxu0 %v850
        %895 = vmatmul.f32.gmra.mxu0 %v877
        %v896 = vpop.f32.mrf.mxu0
        %v897 = vadd.f32 0.0, %v896
        %898 = vdwg.mxu0
        %v900 = vsel %vm587, %v821, 0
        %902 = vmatpush.msra.mxu0 0.0
        %903 = vmatpush.msra.mxu0 0.0
        %904 = vmatpush.msra.mxu0 0.0
        %905 = vmatpush.msra.mxu0 0.0
        %906 = vmatpush.msra.mxu0 0.0
        %907 = vmatpush.msra.mxu0 0.0
        %908 = vmatpush.msra.mxu0 0.0
        %909 = vmatpush.msra.mxu0 0.0
        %910 = vmatpush.msra.mxu0 0.0
        %911 = vmatpush.msra.mxu0 0.0
        %912 = vmatpush.msra.mxu0 0.0
        %913 = vmatpush.msra.mxu0 0.0
        %914 = vmatpush.msra.mxu0 0.0
        %915 = vmatpush.msra.mxu0 0.0
        %916 = vmatpush.msra.mxu0 0.0
        %917 = vmatpush.msra.mxu0 %v851
        %918 = vmatmul.f32.gmra.mxu0 %v900
        %v919 = vpop.f32.mrf.mxu0
        %v920 = vadd.f32 0.0, %v919
        %921 = vdwg.mxu0
        %v923 = vsel %vm587, %v847, 0
        %925 = vmatpush.msra.mxu0 0.0
        %926 = vmatpush.msra.mxu0 0.0
        %927 = vmatpush.msra.mxu0 0.0
        %928 = vmatpush.msra.mxu0 0.0
        %929 = vmatpush.msra.mxu0 0.0
        %930 = vmatpush.msra.mxu0 0.0
        %931 = vmatpush.msra.mxu0 0.0
        %932 = vmatpush.msra.mxu0 0.0
        %933 = vmatpush.msra.mxu0 0.0
        %934 = vmatpush.msra.mxu0 0.0
        %935 = vmatpush.msra.mxu0 0.0
        %936 = vmatpush.msra.mxu0 0.0
        %937 = vmatpush.msra.mxu0 0.0
        %938 = vmatpush.msra.mxu0 0.0
        %939 = vmatpush.msra.mxu0 0.0
        %940 = vmatpush.msra.mxu0 %v852
        %941 = vmatmul.f32.gmra.mxu0 %v923
        %v942 = vpop.f32.mrf.mxu0
        %v943 = vadd.f32 0.0, %v942
        %944 = vdwg.mxu0
        %v945 = vsel %vm554, %v874, 0.0
        %v946 = vsel %vm554, %v897, 0.0
        %v947 = vadd.f32 %v945, %v946
        %v948 = vsel %vm554, %v920, 0.0
        %v949 = vadd.f32 %v947, %v948
        %v950 = vsel %vm554, %v943, 0.0
        %v951 = vadd.f32 %v949, %v950
        %v952 = vld [vmem:[%s5] sm:$0x1]
        %v954 = vperm.slane %v952, 0
        %v956 = vadd.f32 %v951, %v954
        %v957 = vadd.f32 %v544, %v956
        %v958 = vld [vmem:[%s6] sm:$0x1]
        %v959 = vld [vmem:[%s7] sm:$0x1]
        %v960 = vsel %vm554, %v957, 0.0
        %961 = vadd.xlane.f32.xlu0 %v960
        %v962 = vpop.xlane.xlu0 %961
        %v963 = vrcp.pop 32.0
        %v964 = vmul.f32 32.0, %v963
        %v965 = vsub.f32 1.0, %v964
        %v966 = vmul.f32 %v963, %v965
        %v967 = vadd.f32 %v963, %v966
        %vm968 = vweird.f32 %v963
        %v969 = vsel %vm968, %v963, %v967
        %v970 = vmul.f32 %v962, %v969
        %v971 = vsub.f32 %v957, %v970
        %v972 = vmul.f32 %v971, %v971
        %v973 = vsel %vm554, %v972, 0.0
        %974 = vadd.xlane.f32.xlu0 %v973
        %v975 = vpop.xlane.xlu0 %974
        %v976 = vmul.f32 %v975, %v969
        %v977 = vadd.f32 %v976, 1e-05
        %v978 = vrsqrt.pop %v977
        %v979 = vmul.f32 %v978, %v977
        %v980 = vmul.f32 %v979, %v978
        %v981 = vmul.f32 0.5, %v980
        %v982 = vsub.f32 1.5, %v981
        %v983 = vmul.f32 %v978, %v982
        %vm984 = vweird.f32 %v977
        %vm985 = vweird.f32 %v978
        %vm986 = vmor %vm984, %vm985
        %v987 = vsel %vm986, %v978, %v983
        %v988 = vmul.f32 %v971, %v987
        %v990 = vperm.slane %v958, 0
        %v992 = vmul.f32 %v988, %v990
        %v994 = vperm.slane %v959, 0
        %v996 = vadd.f32 %v992, %v994
        %v997 = vld [vmem:[#allocation7] sm:$0xff]
        %v998 = vld [vmem:[#allocation7 + $0x8] sm:$0xff]
        %v999 = vld [vmem:[#allocation7 + $0x10] sm:$0xff]
        %v1000 = vld [vmem:[#allocation7 + $0x18] sm:$0xff]
        %v1001 = vld [vmem:[%s9] sm:$0x1]
        %v1003 = vperm.slane %v1001, 0
        %v1006 = vsel %vm554, %v996, 0
        %1008 = vmatpush.msra.mxu0 0.0
        %1009 = vmatpush.msra.mxu0 0.0
        %1010 = vmatpush.msra.mxu0 0.0
        %1011 = vmatpush.msra.mxu0 0.0
        %1012 = vmatpush.msra.mxu0 0.0
        %1013 = vmatpush.msra.mxu0 0.0
        %1014 = vmatpush.msra.mxu0 0.0
        %1015 = vmatpush.msra.mxu0 0.0
        %1016 = vmatpush.msra.mxu0 0.0
        %1017 = vmatpush.msra.mxu0 0.0
        %1018 = vmatpush.msra.mxu0 0.0
        %1019 = vmatpush.msra.mxu0 0.0
        %1020 = vmatpush.msra.mxu0 %v1000
        %1021 = vmatpush.msra.mxu0 %v999
        %1022 = vmatpush.msra.mxu0 %v998
        %1023 = vmatpush.msra.mxu0 %v997
        %1024 = vmatmul.f32.gmra.mxu0 %v1006
        %v1025 = vpop.f32.mrf.mxu0
        %v1026 = vadd.f32 %v1003, %v1025
        %1027 = vdwg.mxu0
        %v1028 = vmax.f32 %v1026, 0.0
        %v1029 = vld [vmem:[#allocation8] sm:$0xff]
        %v1030 = vld [vmem:[#allocation8 + $0x8] sm:$0xff]
        %v1031 = vld [vmem:[#allocation8 + $0x10] sm:$0xff]
        %v1032 = vld [vmem:[#allocation8 + $0x18] sm:$0xff]
        %v1033 = vld [vmem:[%s11] sm:$0x1]
        %v1035 = vperm.slane %v1033, 0
        %v1038 = vsel %vm554, %v1028, 0
        %1040 = vmatpush.msra.mxu0 0.0
        %1041 = vmatpush.msra.mxu0 0.0
        %1042 = vmatpush.msra.mxu0 0.0
        %1043 = vmatpush.msra.mxu0 0.0
        %1044 = vmatpush.msra.mxu0 0.0
        %1045 = vmatpush.msra.mxu0 0.0
        %1046 = vmatpush.msra.mxu0 0.0
        %1047 = vmatpush.msra.mxu0 0.0
        %1048 = vmatpush.msra.mxu0 0.0
        %1049 = vmatpush.msra.mxu0 0.0
        %1050 = vmatpush.msra.mxu0 0.0
        %1051 = vmatpush.msra.mxu0 0.0
        %1052 = vmatpush.msra.mxu0 %v1032
        %1053 = vmatpush.msra.mxu0 %v1031
        %1054 = vmatpush.msra.mxu0 %v1030
        %1055 = vmatpush.msra.mxu0 %v1029
        %1056 = vmatmul.f32.gmra.mxu0 %v1038
        %v1057 = vpop.f32.mrf.mxu0
        %v1058 = vadd.f32 %v1035, %v1057
        %1059 = vdwg.mxu0
        %v1060 = vadd.f32 %v996, %v1058
        %v1061 = vld [vmem:[%s12] sm:$0x1]
        %v1062 = vld [vmem:[%s13] sm:$0x1]
        %v1063 = vsel %vm554, %v1060, 0.0
        %1064 = vadd.xlane.f32.xlu0 %v1063
        %v1065 = vpop.xlane.xlu0 %1064
        %v1066 = vmul.f32 %v1065, %v969
        %v1067 = vsub.f32 %v1060, %v1066
        %v1068 = vmul.f32 %v1067, %v1067
        %v1069 = vsel %vm554, %v1068, 0.0
        %1070 = vadd.xlane.f32.xlu0 %v1069
        %v1071 = vpop.xlane.xlu0 %1070
        %v1072 = vmul.f32 %v1071, %v969
        %v1073 = vadd.f32 %v1072, 1e-05
        %v1074 = vrsqrt.pop %v1073
        %v1075 = vmul.f32 %v1074, %v1073
        %v1076 = vmul.f32 %v1075, %v1074
        %v1077 = vmul.f32 0.5, %v1076
        %v1078 = vsub.f32 1.5, %v1077
        %v1079 = vmul.f32 %v1074, %v1078
        %vm1080 = vweird.f32 %v1073
        %vm1081 = vweird.f32 %v1074
        %vm1082 = vmor %vm1080, %vm1081
        %v1083 = vsel %vm1082, %v1074, %v1079
        %v1084 = vmul.f32 %v1067, %v1083
        %v1086 = vperm.slane %v1061, 0
        %v1088 = vmul.f32 %v1084, %v1086
        %v1090 = vperm.slane %v1062, 0
        %v1092 = vadd.f32 %v1088, %v1090
        %1093 = vst.msk [vmem:[%s536] sm:$0xff] %vm554, %v1092
        %s1094 = scalar_lea.vmem [#allocation2], 32
        %v1095 = vld [vmem:[%s1094] sm:$0xff]
        %v1096 = vld [vmem:[%s1094 + $0x8] sm:$0xff]
        %v1097 = vld [vmem:[%s1094 + $0x10] sm:$0xff]
        %v1098 = vld [vmem:[%s1094 + $0x18] sm:$0xff]
        %s1099 = scalar_lea.vmem %s3, 1
        %v1100 = vld [vmem:[%s1099] sm:$0x1]
        %v1102 = vperm.slane %v1100, 0
        %v1105 = vsel %vm554, %v1092, 0
        %1107 = vmatpush.msra.mxu0 0.0
        %1108 = vmatpush.msra.mxu0 0.0
        %1109 = vmatpush.msra.mxu0 0.0
        %1110 = vmatpush.msra.mxu0 0.0
        %1111 = vmatpush.msra.mxu0 0.0
        %1112 = vmatpush.msra.mxu0 0.0
        %1113 = vmatpush.msra.mxu0 0.0
        %1114 = vmatpush.msra.mxu0 0.0
        %1115 = vmatpush.msra.mxu0 0.0
        %1116 = vmatpush.msra.mxu0 0.0
        %1117 = vmatpush.msra.mxu0 0.0
        %1118 = vmatpush.msra.mxu0 0.0
        %1119 = vmatpush.msra.mxu0 %v1098
        %1120 = vmatpush.msra.mxu0 %v1097
        %1121 = vmatpush.msra.mxu0 %v1096
        %1122 = vmatpush.msra.mxu0 %v1095
        %1123 = vmatmul.f32.gmra.mxu0 %v1105
        %v1124 = vpop.f32.mrf.mxu0
        %v1125 = vadd.f32 %v1102, %v1124
        %1126 = vdwg.mxu0
        %1128 = vrot.lane.b32.xlu0 %v1125, 120
        %v1129 = vpop.permute.xlu0 %1128
        %1130 = vrot.lane.b32.xlu0 %v1125, 112
        %v1131 = vpop.permute.xlu0 %1130
        %1132 = vrot.lane.b32.xlu0 %v1125, 104
        %v1133 = vpop.permute.xlu0 %1132
        %1134 = vrot.lane.b32.xlu0 %v1125, 96
        %v1135 = vpop.permute.xlu0 %1134
        %v1136 = vsel %vm587, %v1125, 0
        %v1138 = vsel %vm587, %v1135, 0
        %1140 = vmatpush.xpose.msra.mxu0 0.0
        %1141 = vmatpush.xpose.msra.mxu0 0.0
        %1142 = vmatpush.xpose.msra.mxu0 0.0
        %1143 = vmatpush.xpose.msra.mxu0 0.0
        %1144 = vmatpush.xpose.msra.mxu0 0.0
        %1145 = vmatpush.xpose.msra.mxu0 0.0
        %1146 = vmatpush.xpose.msra.mxu0 0.0
        %1147 = vmatpush.xpose.msra.mxu0 0.0
        %1148 = vmatpush.xpose.msra.mxu0 0.0
        %1149 = vmatpush.xpose.msra.mxu0 0.0
        %1150 = vmatpush.xpose.msra.mxu0 0.0
        %1151 = vmatpush.xpose.msra.mxu0 0.0
        %1152 = vmatpush.xpose.msra.mxu0 0.0
        %1153 = vmatpush.xpose.msra.mxu0 0.0
        %1154 = vmatpush.xpose.msra.mxu0 0.0
        %1155 = vmatpush.xpose.msra.mxu0 %v1138
        %1156 = vmatmul.f32.gmra.mxu0 %v1136
        %v1157 = vpop.f32.mrf.mxu0
        %v1158 = vadd.f32 0.0, %v1157
        %1159 = vdwg.mxu0
        %1160 = vrot.lane.b32.xlu0 %v1129, 96
        %v1161 = vpop.permute.xlu0 %1160
        %v1162 = vsel %vm587, %v1129, 0
        %v1164 = vsel %vm587, %v1161, 0
        %1166 = vmatpush.xpose.msra.mxu0 0.0
        %1167 = vmatpush.xpose.msra.mxu0 0.0
        %1168 = vmatpush.xpose.msra.mxu0 0.0
        %1169 = vmatpush.xpose.msra.mxu0 0.0
        %1170 = vmatpush.xpose.msra.mxu0 0.0
        %1171 = vmatpush.xpose.msra.mxu0 0.0
        %1172 = vmatpush.xpose.msra.mxu0 0.0
        %1173 = vmatpush.xpose.msra.mxu0 0.0
        %1174 = vmatpush.xpose.msra.mxu0 0.0
        %1175 = vmatpush.xpose.msra.mxu0 0.0
        %1176 = vmatpush.xpose.msra.mxu0 0.0
        %1177 = vmatpush.xpose.msra.mxu0 0.0
        %1178 = vmatpush.xpose.msra.mxu0 0.0
        %1179 = vmatpush.xpose.msra.mxu0 0.0
        %1180 = vmatpush.xpose.msra.mxu0 0.0
        %1181 = vmatpush.xpose.msra.mxu0 %v1164
        %1182 = vmatmul.f32.gmra.mxu0 %v1162
        %v1183 = vpop.f32.mrf.mxu0
        %v1184 = vadd.f32 0.0, %v1183
        %1185 = vdwg.mxu0
        %1186 = vrot.lane.b32.xlu0 %v1131, 96
        %v1187 = vpop.permute.xlu0 %1186
        %v1188 = vsel %vm587, %v1131, 0
        %v1190 = vsel %vm587, %v1187, 0
        %1192 = vmatpush.xpose.msra.mxu0 0.0
        %1193 = vmatpush.xpose.msra.mxu0 0.0
        %1194 = vmatpush.xpose.msra.mxu0 0.0
        %1195 = vmatpush.xpose.msra.mxu0 0.0
        %1196 = vmatpush.xpose.msra.mxu0 0.0
        %1197 = vmatpush.xpose.msra.mxu0 0.0
        %1198 = vmatpush.xpose.msra.mxu0 0.0
        %1199 = vmatpush.xpose.msra.mxu0 0.0
        %1200 = vmatpush.xpose.msra.mxu0 0.0
        %1201 = vmatpush.xpose.msra.mxu0 0.0
        %1202 = vmatpush.xpose.msra.mxu0 0.0
        %1203 = vmatpush.xpose.msra.mxu0 0.0
        %1204 = vmatpush.xpose.msra.mxu0 0.0
        %1205 = vmatpush.xpose.msra.mxu0 0.0
        %1206 = vmatpush.xpose.msra.mxu0 0.0
        %1207 = vmatpush.xpose.msra.mxu0 %v1190
        %1208 = vmatmul.f32.gmra.mxu0 %v1188
        %v1209 = vpop.f32.mrf.mxu0
        %v1210 = vadd.f32 0.0, %v1209
        %1211 = vdwg.mxu0
        %1212 = vrot.lane.b32.xlu0 %v1133, 96
        %v1213 = vpop.permute.xlu0 %1212
        %v1214 = vsel %vm587, %v1133, 0
        %v1216 = vsel %vm587, %v1213, 0
        %1218 = vmatpush.xpose.msra.mxu0 0.0
        %1219 = vmatpush.xpose.msra.mxu0 0.0
        %1220 = vmatpush.xpose.msra.mxu0 0.0
        %1221 = vmatpush.xpose.msra.mxu0 0.0
        %1222 = vmatpush.xpose.msra.mxu0 0.0
        %1223 = vmatpush.xpose.msra.mxu0 0.0
        %1224 = vmatpush.xpose.msra.mxu0 0.0
        %1225 = vmatpush.xpose.msra.mxu0 0.0
        %1226 = vmatpush.xpose.msra.mxu0 0.0
        %1227 = vmatpush.xpose.msra.mxu0 0.0
        %1228 = vmatpush.xpose.msra.mxu0 0.0
        %1229 = vmatpush.xpose.msra.mxu0 0.0
        %1230 = vmatpush.xpose.msra.mxu0 0.0
        %1231 = vmatpush.xpose.msra.mxu0 0.0
        %1232 = vmatpush.xpose.msra.mxu0 0.0
        %1233 = vmatpush.xpose.msra.mxu0 %v1216
        %1234 = vmatmul.f32.gmra.mxu0 %v1214
        %v1235 = vpop.f32.mrf.mxu0
        %v1236 = vadd.f32 0.0, %v1235
        %1237 = vdwg.mxu0
        %v1238 = vmul.f32 %v1158, 0.35355338
        %v1239 = vmul.f32 %v1184, 0.35355338
        %v1240 = vmul.f32 %v1210, 0.35355338
        %v1241 = vmul.f32 %v1236, 0.35355338
        %v1242 = vadd.f32 %v1238, %v695
        %v1243 = vadd.f32 %v1239, %v695
        %v1244 = vadd.f32 %v1240, %v695
        %v1245 = vadd.f32 %v1241, %v695
        %v1246 = vsel %vm587, %v1242, -inf
        %1247 = vmax.xlane.f32.xlu0 %v1246
        %v1248 = vpop.xlane.xlu0 %1247
        %v1249 = vsel %vm587, %v1243, -inf
        %1250 = vmax.xlane.f32.xlu0 %v1249
        %v1251 = vpop.xlane.xlu0 %1250
        %v1252 = vsel %vm587, %v1244, -inf
        %1253 = vmax.xlane.f32.xlu0 %v1252
        %v1254 = vpop.xlane.xlu0 %1253
        %v1255 = vsel %vm587, %v1245, -inf
        %1256 = vmax.xlane.f32.xlu0 %v1255
        %v1257 = vpop.xlane.xlu0 %1256
        %v1258 = vsub.f32 %v1242, %v1248
        %v1259 = vsub.f32 %v1243, %v1251
        %v1260 = vsub.f32 %v1244, %v1254
        %v1261 = vsub.f32 %v1245, %v1257
        %v1262 = vmul.f32 %v1258, 1.442695
        %v1263 = vpow.pop %v1262
        %v1264 = vmul.f32 %v1259, 1.442695
        %v1265 = vpow.pop %v1264
        %v1266 = vmul.f32 %v1260, 1.442695
        %v1267 = vpow.pop %v1266
        %v1268 = vmul.f32 %v1261, 1.442695
        %v1269 = vpow.pop %v1268
        %v1270 = vsel %vm587, %v1263, 0.0
        %1271 = vadd.xlane.f32.xlu0 %v1270
        %v1272 = vpop.xlane.xlu0 %1271
        %v1273 = vsel %vm587, %v1265, 0.0
        %1274 = vadd.xlane.f32.xlu0 %v1273
        %v1275 = vpop.xlane.xlu0 %1274
        %v1276 = vsel %vm587, %v1267, 0.0
        %1277 = vadd.xlane.f32.xlu0 %v1276
        %v1278 = vpop.xlane.xlu0 %1277
        %v1279 = vsel %vm587, %v1269, 0.0
        %1280 = vadd.xlane.f32.xlu0 %v1279
        %v1281 = vpop.xlane.xlu0 %1280
        %v1282 = vrcp.pop %v1272
        %v1283 = vrcp.pop %v1275
        %v1284 = vrcp.pop %v1278
        %v1285 = vrcp.pop %v1281
        %v1286 = vmul.f32 %v1263, %v1282
        %v1287 = vmul.f32 %v1265, %v1283
        %v1288 = vmul.f32 %v1267, %v1284
        %v1289 = vmul.f32 %v1269, %v1285
        %1290 = vrot.lane.b32.xlu0 %v1125, 64
        %v1291 = vpop.permute.xlu0 %1290
        %v1294 = vsel %vm587, %v1286, 0
        %1296 = vmatpush.msra.mxu0 0.0
        %1297 = vmatpush.msra.mxu0 0.0
        %1298 = vmatpush.msra.mxu0 0.0
        %1299 = vmatpush.msra.mxu0 0.0
        %1300 = vmatpush.msra.mxu0 0.0
        %1301 = vmatpush.msra.mxu0 0.0
        %1302 = vmatpush.msra.mxu0 0.0
        %1303 = vmatpush.msra.mxu0 0.0
        %1304 = vmatpush.msra.mxu0 0.0
        %1305 = vmatpush.msra.mxu0 0.0
        %1306 = vmatpush.msra.mxu0 0.0
        %1307 = vmatpush.msra.mxu0 0.0
        %1308 = vmatpush.msra.mxu0 0.0
        %1309 = vmatpush.msra.mxu0 0.0
        %1310 = vmatpush.msra.mxu0 0.0
        %1311 = vmatpush.msra.mxu0 %v1291
        %1312 = vmatmul.f32.gmra.mxu0 %v1294
        %v1313 = vpop.f32.mrf.mxu0
        %v1314 = vadd.f32 0.0, %v1313
        %1315 = vdwg.mxu0
        %1316 = vrot.lane.b32.xlu0 %v1129, 64
        %v1317 = vpop.permute.xlu0 %1316
        %v1320 = vsel %vm587, %v1287, 0
        %1322 = vmatpush.msra.mxu0 0.0
        %1323 = vmatpush.msra.mxu0 0.0
        %1324 = vmatpush.msra.mxu0 0.0
        %1325 = vmatpush.msra.mxu0 0.0
        %1326 = vmatpush.msra.mxu0 0.0
        %1327 = vmatpush.msra.mxu0 0.0
        %1328 = vmatpush.msra.mxu0 0.0
        %1329 = vmatpush.msra.mxu0 0.0
        %1330 = vmatpush.msra.mxu0 0.0
        %1331 = vmatpush.msra.mxu0 0.0
        %1332 = vmatpush.msra.mxu0 0.0
        %1333 = vmatpush.msra.mxu0 0.0
        %1334 = vmatpush.msra.mxu0 0.0
        %1335 = vmatpush.msra.mxu0 0.0
        %1336 = vmatpush.msra.mxu0 0.0
        %1337 = vmatpush.msra.mxu0 %v1317
        %1338 = vmatmul.f32.gmra.mxu0 %v1320
        %v1339 = vpop.f32.mrf.mxu0
        %v1340 = vadd.f32 0.0, %v1339
        %1341 = vdwg.mxu0
        %1342 = vrot.lane.b32.xlu0 %v1131, 64
        %v1343 = vpop.permute.xlu0 %1342
        %v1346 = vsel %vm587, %v1288, 0
        %1348 = vmatpush.msra.mxu0 0.0
        %1349 = vmatpush.msra.mxu0 0.0
        %1350 = vmatpush.msra.mxu0 0.0
        %1351 = vmatpush.msra.mxu0 0.0
        %1352 = vmatpush.msra.mxu0 0.0
        %1353 = vmatpush.msra.mxu0 0.0
        %1354 = vmatpush.msra.mxu0 0.0
        %1355 = vmatpush.msra.mxu0 0.0
        %1356 = vmatpush.msra.mxu0 0.0
        %1357 = vmatpush.msra.mxu0 0.0
        %1358 = vmatpush.msra.mxu0 0.0
        %1359 = vmatpush.msra.mxu0 0.0
        %1360 = vmatpush.msra.mxu0 0.0
        %1361 = vmatpush.msra.mxu0 0.0
        %1362 = vmatpush.msra.mxu0 0.0
        %1363 = vmatpush.msra.mxu0 %v1343
        %1364 = vmatmul.f32.gmra.mxu0 %v1346
        %v1365 = vpop.f32.mrf.mxu0
        %v1366 = vadd.f32 0.0, %v1365
        %1367 = vdwg.mxu0
        %1368 = vrot.lane.b32.xlu0 %v1133, 64
        %v1369 = vpop.permute.xlu0 %1368
        %v1372 = vsel %vm587, %v1289, 0
        %1374 = vmatpush.msra.mxu0 0.0
        %1375 = vmatpush.msra.mxu0 0.0
        %1376 = vmatpush.msra.mxu0 0.0
        %1377 = vmatpush.msra.mxu0 0.0
        %1378 = vmatpush.msra.mxu0 0.0
        %1379 = vmatpush.msra.mxu0 0.0
        %1380 = vmatpush.msra.mxu0 0.0
        %1381 = vmatpush.msra.mxu0 0.0
        %1382 = vmatpush.msra.mxu0 0.0
        %1383 = vmatpush.msra.mxu0 0.0
        %1384 = vmatpush.msra.mxu0 0.0
        %1385 = vmatpush.msra.mxu0 0.0
        %1386 = vmatpush.msra.mxu0 0.0
        %1387 = vmatpush.msra.mxu0 0.0
        %1388 = vmatpush.msra.mxu0 0.0
        %1389 = vmatpush.msra.mxu0 %v1369
        %1390 = vmatmul.f32.gmra.mxu0 %v1372
        %v1391 = vpop.f32.mrf.mxu0
        %v1392 = vadd.f32 0.0, %v1391
        %1393 = vdwg.mxu0
        %s1394 = scalar_lea.vmem [#allocation5], 32
        %v1395 = vld [vmem:[%s1394] sm:$0xff]
        %v1396 = vld [vmem:[%s1394 + $0x8] sm:$0xff]
        %v1397 = vld [vmem:[%s1394 + $0x10] sm:$0xff]
        %v1398 = vld [vmem:[%s1394 + $0x18] sm:$0xff]
        %v1400 = vsel %vm587, %v1314, 0
        %1402 = vmatpush.msra.mxu0 0.0
        %1403 = vmatpush.msra.mxu0 0.0
        %1404 = vmatpush.msra.mxu0 0.0
        %1405 = vmatpush.msra.mxu0 0.0
        %1406 = vmatpush.msra.mxu0 0.0
        %1407 = vmatpush.msra.mxu0 0.0
        %1408 = vmatpush.msra.mxu0 0.0
        %1409 = vmatpush.msra.mxu0 0.0
        %1410 = vmatpush.msra.mxu0 0.0
        %1411 = vmatpush.msra.mxu0 0.0
        %1412 = vmatpush.msra.mxu0 0.0
        %1413 = vmatpush.msra.mxu0 0.0
        %1414 = vmatpush.msra.mxu0 0.0
        %1415 = vmatpush.msra.mxu0 0.0
        %1416 = vmatpush.msra.mxu0 0.0
        %1417 = vmatpush.msra.mxu0 %v1395
        %1418 = vmatmul.f32.gmra.mxu0 %v1400
        %v1419 = vpop.f32.mrf.mxu0
        %v1420 = vadd.f32 0.0, %v1419
        %1421 = vdwg.mxu0
        %v1423 = vsel %vm587, %v1340, 0
        %1425 = vmatpush.msra.mxu0 0.0
        %1426 = vmatpush.msra.mxu0 0.0
        %1427 = vmatpush.msra.mxu0 0.0
        %1428 = vmatpush.msra.mxu0 0.0
        %1429 = vmatpush.msra.mxu0 0.0
        %1430 = vmatpush.msra.mxu0 0.0
        %1431 = vmatpush.msra.mxu0 0.0
        %1432 = vmatpush.msra.mxu0 0.0
        %1433 = vmatpush.msra.mxu0 0.0
        %1434 = vmatpush.msra.mxu0 0.0
        %1435 = vmatpush.msra.mxu0 0.0
        %1436 = vmatpush.msra.mxu0 0.0
        %1437 = vmatpush.msra.mxu0 0.0
        %1438 = vmatpush.msra.mxu0 0.0
        %1439 = vmatpush.msra.mxu0 0.0
        %1440 = vmatpush.msra.mxu0 %v1396
        %1441 = vmatmul.f32.gmra.mxu0 %v1423
        %v1442 = vpop.f32.mrf.mxu0
        %v1443 = vadd.f32 0.0, %v1442
        %1444 = vdwg.mxu0
        %v1446 = vsel %vm587, %v1366, 0
        %1448 = vmatpush.msra.mxu0 0.0
        %1449 = vmatpush.msra.mxu0 0.0
        %1450 = vmatpush.msra.mxu0 0.0
        %1451 = vmatpush.msra.mxu0 0.0
        %1452 = vmatpush.msra.mxu0 0.0
        %1453 = vmatpush.msra.mxu0 0.0
        %1454 = vmatpush.msra.mxu0 0.0
        %1455 = vmatpush.msra.mxu0 0.0
        %1456 = vmatpush.msra.mxu0 0.0
        %1457 = vmatpush.msra.mxu0 0.0
        %1458 = vmatpush.msra.mxu0 0.0
        %1459 = vmatpush.msra.mxu0 0.0
        %1460 = vmatpush.msra.mxu0 0.0
        %1461 = vmatpush.msra.mxu0 0.0
        %1462 = vmatpush.msra.mxu0 0.0
        %1463 = vmatpush.msra.mxu0 %v1397
        %1464 = vmatmul.f32.gmra.mxu0 %v1446
        %v1465 = vpop.f32.mrf.mxu0
        %v1466 = vadd.f32 0.0, %v1465
        %1467 = vdwg.mxu0
        %v1469 = vsel %vm587, %v1392, 0
        %1471 = vmatpush.msra.mxu0 0.0
        %1472 = vmatpush.msra.mxu0 0.0
        %1473 = vmatpush.msra.mxu0 0.0
        %1474 = vmatpush.msra.mxu0 0.0
        %1475 = vmatpush.msra.mxu0 0.0
        %1476 = vmatpush.msra.mxu0 0.0
        %1477 = vmatpush.msra.mxu0 0.0
        %1478 = vmatpush.msra.mxu0 0.0
        %1479 = vmatpush.msra.mxu0 0.0
        %1480 = vmatpush.msra.mxu0 0.0
        %1481 = vmatpush.msra.mxu0 0.0
        %1482 = vmatpush.msra.mxu0 0.0
        %1483 = vmatpush.msra.mxu0 0.0
        %1484 = vmatpush.msra.mxu0 0.0
        %1485 = vmatpush.msra.mxu0 0.0
        %1486 = vmatpush.msra.mxu0 %v1398
        %1487 = vmatmul.f32.gmra.mxu0 %v1469
        %v1488 = vpop.f32.mrf.mxu0
        %v1489 = vadd.f32 0.0, %v1488
        %1490 = vdwg.mxu0
        %v1491 = vsel %vm554, %v1420, 0.0
        %v1492 = vsel %vm554, %v1443, 0.0
        %v1493 = vadd.f32 %v1491, %v1492
        %v1494 = vsel %vm554, %v1466, 0.0
        %v1495 = vadd.f32 %v1493, %v1494
        %v1496 = vsel %vm554, %v1489, 0.0
        %v1497 = vadd.f32 %v1495, %v1496
        %s1498 = scalar_lea.vmem %s5, 1
        %v1499 = vld [vmem:[%s1498] sm:$0x1]
        %v1501 = vperm.slane %v1499, 0
        %v1503 = vadd.f32 %v1497, %v1501
        %v1504 = vadd.f32 %v1092, %v1503
        %s1505 = scalar_lea.vmem %s6, 1
        %v1506 = vld [vmem:[%s1505] sm:$0x1]
        %s1507 = scalar_lea.vmem %s7, 1
        %v1508 = vld [vmem:[%s1507] sm:$0x1]
        %v1509 = vsel %vm554, %v1504, 0.0
        %1510 = vadd.xlane.f32.xlu0 %v1509
        %v1511 = vpop.xlane.xlu0 %1510
        %v1512 = vmul.f32 %v1511, %v969
        %v1513 = vsub.f32 %v1504, %v1512
        %v1514 = vmul.f32 %v1513, %v1513
        %v1515 = vsel %vm554, %v1514, 0.0
        %1516 = vadd.xlane.f32.xlu0 %v1515
        %v1517 = vpop.xlane.xlu0 %1516
        %v1518 = vmul.f32 %v1517, %v969
        %v1519 = vadd.f32 %v1518, 1e-05
        %v1520 = vrsqrt.pop %v1519
        %v1521 = vmul.f32 %v1520, %v1519
        %v1522 = vmul.f32 %v1521, %v1520
        %v1523 = vmul.f32 0.5, %v1522
        %v1524 = vsub.f32 1.5, %v1523
        %v1525 = vmul.f32 %v1520, %v1524
        %vm1526 = vweird.f32 %v1519
        %vm1527 = vweird.f32 %v1520
        %vm1528 = vmor %vm1526, %vm1527
        %v1529 = vsel %vm1528, %v1520, %v1525
        %v1530 = vmul.f32 %v1513, %v1529
        %v1532 = vperm.slane %v1506, 0
        %v1534 = vmul.f32 %v1530, %v1532
        %v1536 = vperm.slane %v1508, 0
        %v1538 = vadd.f32 %v1534, %v1536
        %s1539 = scalar_lea.vmem [#allocation7], 32
        %v1540 = vld [vmem:[%s1539] sm:$0xff]
        %v1541 = vld [vmem:[%s1539 + $0x8] sm:$0xff]
        %v1542 = vld [vmem:[%s1539 + $0x10] sm:$0xff]
        %v1543 = vld [vmem:[%s1539 + $0x18] sm:$0xff]
        %s1544 = scalar_lea.vmem %s9, 1
        %v1545 = vld [vmem:[%s1544] sm:$0x1]
        %v1547 = vperm.slane %v1545, 0
        %v1550 = vsel %vm554, %v1538, 0
        %1552 = vmatpush.msra.mxu0 0.0
        %1553 = vmatpush.msra.mxu0 0.0
        %1554 = vmatpush.msra.mxu0 0.0
        %1555 = vmatpush.msra.mxu0 0.0
        %1556 = vmatpush.msra.mxu0 0.0
        %1557 = vmatpush.msra.mxu0 0.0
        %1558 = vmatpush.msra.mxu0 0.0
        %1559 = vmatpush.msra.mxu0 0.0
        %1560 = vmatpush.msra.mxu0 0.0
        %1561 = vmatpush.msra.mxu0 0.0
        %1562 = vmatpush.msra.mxu0 0.0
        %1563 = vmatpush.msra.mxu0 0.0
        %1564 = vmatpush.msra.mxu0 %v1543
        %1565 = vmatpush.msra.mxu0 %v1542
        %1566 = vmatpush.msra.mxu0 %v1541
        %1567 = vmatpush.msra.mxu0 %v1540
        %1568 = vmatmul.f32.gmra.mxu0 %v1550
        %v1569 = vpop.f32.mrf.mxu0
        %v1570 = vadd.f32 %v1547, %v1569
        %1571 = vdwg.mxu0
        %v1572 = vmax.f32 %v1570, 0.0
        %s1573 = scalar_lea.vmem [#allocation8], 32
        %v1574 = vld [vmem:[%s1573] sm:$0xff]
        %v1575 = vld [vmem:[%s1573 + $0x8] sm:$0xff]
        %v1576 = vld [vmem:[%s1573 + $0x10] sm:$0xff]
        %v1577 = vld [vmem:[%s1573 + $0x18] sm:$0xff]
        %s1578 = scalar_lea.vmem %s11, 1
        %v1579 = vld [vmem:[%s1578] sm:$0x1]
        %v1581 = vperm.slane %v1579, 0
        %v1584 = vsel %vm554, %v1572, 0
        %1586 = vmatpush.msra.mxu0 0.0
        %1587 = vmatpush.msra.mxu0 0.0
        %1588 = vmatpush.msra.mxu0 0.0
        %1589 = vmatpush.msra.mxu0 0.0
        %1590 = vmatpush.msra.mxu0 0.0
        %1591 = vmatpush.msra.mxu0 0.0
        %1592 = vmatpush.msra.mxu0 0.0
        %1593 = vmatpush.msra.mxu0 0.0
        %1594 = vmatpush.msra.mxu0 0.0
        %1595 = vmatpush.msra.mxu0 0.0
        %1596 = vmatpush.msra.mxu0 0.0
        %1597 = vmatpush.msra.mxu0 0.0
        %1598 = vmatpush.msra.mxu0 %v1577
        %1599 = vmatpush.msra.mxu0 %v1576
        %1600 = vmatpush.msra.mxu0 %v1575
        %1601 = vmatpush.msra.mxu0 %v1574
        %1602 = vmatmul.f32.gmra.mxu0 %v1584
        %v1603 = vpop.f32.mrf.mxu0
        %v1604 = vadd.f32 %v1581, %v1603
        %1605 = vdwg.mxu0
        %v1606 = vadd.f32 %v1538, %v1604
        %s1607 = scalar_lea.vmem %s12, 1
        %v1608 = vld [vmem:[%s1607] sm:$0x1]
        %s1609 = scalar_lea.vmem %s13, 1
        %v1610 = vld [vmem:[%s1609] sm:$0x1]
        %v1611 = vsel %vm554, %v1606, 0.0
        %1612 = vadd.xlane.f32.xlu0 %v1611
        %v1613 = vpop.xlane.xlu0 %1612
        %v1614 = vmul.f32 %v1613, %v969
        %v1615 = vsub.f32 %v1606, %v1614
        %v1616 = vmul.f32 %v1615, %v1615
        %v1617 = vsel %vm554, %v1616, 0.0
        %1618 = vadd.xlane.f32.xlu0 %v1617
        %v1619 = vpop.xlane.xlu0 %1618
        %v1620 = vmul.f32 %v1619, %v969
        %v1621 = vadd.f32 %v1620, 1e-05
        %v1622 = vrsqrt.pop %v1621
        %v1623 = vmul.f32 %v1622, %v1621
        %v1624 = vmul.f32 %v1623, %v1622
        %v1625 = vmul.f32 0.5, %v1624
        %v1626 = vsub.f32 1.5, %v1625
        %v1627 = vmul.f32 %v1622, %v1626
        %vm1628 = vweird.f32 %v1621
        %vm1629 = vweird.f32 %v1622
        %vm1630 = vmor %vm1628, %vm1629
        %v1631 = vsel %vm1630, %v1622, %v1627
        %v1632 = vmul.f32 %v1615, %v1631
        %v1634 = vperm.slane %v1608, 0
        %v1636 = vmul.f32 %v1632, %v1634
        %v1638 = vperm.slane %v1610, 0
        %v1640 = vadd.f32 %v1636, %v1638
        %s1641 = scalar_lea.vmem %s536, 8 [#allocation10]
        %1642 = vst.msk [vmem:[%s1641] sm:$0xff] %vm554, %v1640
        %s1643 = sand.u32 %s343, 1
        %s1644 = scalar_lea.sflag [#allocation4], %s1643
        %s1645 = sand.u32 %s343, 1
        %s1646 = smul.addr %s1645, 16
        %s1647 = scalar_lea.vmem [#allocation10], %s1646
        // Predicated region
        $region93: #{multi_level_encoder.1} parent=75 // pred_check
          %p1648 = pneg %p353
        $region94: #{multi_level_encoder.1} parent=75 // pred_check_branch
          %1650 = sbr.rel (%p1648) target = $region96
        $region95: #{multi_level_encoder.1} parent=75 // pred_region
          %1652 = vsyncadd %s1644, 0
          %s1653 = smul.addr %s31, 2
          %s1654 = smul.addr %s1653, 8
          %s1655 = scalar_lea.hbm %s14, %s1654
          %s1656 = sshll.u32 %s1647, 4
          %s1657 = int_to_ptr.vmem [resolvable:$true] %s1656
          %s1658 = sshll.u32 %s1655, 4
          %s1659 = int_to_ptr.hbm [resolvable:$true] %s1658
          %1664 = dma.vmem_to_hbm [thread:$0]  %s1657, 256, %s1659, %s1644, 128, 128, 8
        $region96: #{multi_level_encoder.1} parent=75 // pred_fallthru
          _
      $region76: #{multi_level_encoder.1} parent=5 // pred_fallthru
        _
      %p1665 = scmp.le.s32.totalorder 2, %s26
      // Predicated region
      $region97: #{multi_level_encoder.1} parent=5 // pred_check
        %p1666 = pneg %p1665
      $region98: #{multi_level_encoder.1} parent=5 // pred_check_branch
        %1668 = sbr.rel (%p1666) target = $region100
      $region99: #{multi_level_encoder.1} parent=5 // pred_region
        %s1669 = ssub.s32 %s26, 2
        // Predicated region
        $region101: #{multi_level_encoder.1} parent=99 // pred_check
          %p1670 = pneg %p359
        $region102: #{multi_level_encoder.1} parent=99 // pred_check_branch
          %1672 = sbr.rel (%p1670) target = $region104
        $region103: #{multi_level_encoder.1} parent=99 // pred_region
          %s1673 = sand.u32 %s344, 1
          %s1674 = scalar_lea.sflag [#allocation4], %s1673
          %s1675 = sand.u32 %s344, 1
          %s1676 = smul.addr %s1675, 16
          %s1677 = scalar_lea.vmem [#allocation10], %s1676
          %1679 = dma.done %s1674, 256
        $region104: #{multi_level_encoder.1} parent=99 // pred_fallthru
          _
      $region100: #{multi_level_encoder.1} parent=5 // pred_fallthru
        _
    $region6: #{multi_level_encoder.1} parent=1 // loop_footer
      %s30 = sadd.s32 1, %s26
    $region7: #{multi_level_encoder.1} parent=1 // loop_footer_branch
      %25 = sbr.rel target = $region3
    $region8: #{multi_level_encoder.1} parent=1 // loop_exit
      _
    %1680 = vsyncpa [#allocation3], 1
    %s1681 = scalar_lea.sflag [#allocation3], 1
    %1682 = vsyncpa %s1681, 1
    %1683 = vsyncpa [#allocation6], 1
    %1684 = vsyncpa [#allocation9], 1
    %1685 = vsyncpa [#allocation4], 1
    %s1686 = scalar_lea.sflag [#allocation4], 1
    %1687 = vsyncpa %s1686, 1

</llo_original>
